<compile_context>
chip_gen: v7x
topology: tpu7x:2x2x1
jax: 0.10.0
libtpu: 0.0.40
codegen_flags: <defaults>
</compile_context>

<pallas_src>
import jax
import jax.numpy as jnp
from jax.experimental import pallas as pl
from jax.experimental.pallas import tpu as pltpu


# --------------------------------- kernel ------------------------------------

def _conv_pool_relu_kernel(w_ref, b_ref, p_ref, o_ref):
    """o[co, m] = relu( max_q  sum_k w[co, k] * p[q, k, m]  + b[co] ).

    w_ref: (C_out, K)      flattened conv weights, K = k*k*C_in
    b_ref: (C_out, 1)      bias
    p_ref: (1, 4, K, M)    im2col patches; q axis = 2x2 max-pool positions,
                           M = number of pooled output pixels
    o_ref: (1, C_out, M)
    """
    w = w_ref[...]
    acc = jnp.dot(w, p_ref[0, 0], preferred_element_type=jnp.float32)
    for q in range(1, 4):
        acc = jnp.maximum(
            acc, jnp.dot(w, p_ref[0, q], preferred_element_type=jnp.float32))
    o_ref[0] = jnp.maximum(acc + b_ref[...], 0.0).astype(o_ref.dtype)


def _conv_pool_relu(w2d, b2d, patches, c_out, m):
    """Runs the fused conv+bias+maxpool+relu kernel over a batch."""
    B = patches.shape[0]
    k = w2d.shape[1]
    return pl.pallas_call(
        _conv_pool_relu_kernel,
        out_shape=jax.ShapeDtypeStruct((B, c_out, m), jnp.float32),
        grid_spec=pltpu.PrefetchScalarGridSpec(
            num_scalar_prefetch=0,
            grid=(B,),
            in_specs=[
                pl.BlockSpec((c_out, k), lambda b: (0, 0)),
                pl.BlockSpec((c_out, 1), lambda b: (0, 0)),
                pl.BlockSpec((1, 4, k, m), lambda b: (b, 0, 0, 0)),
            ],
            out_specs=pl.BlockSpec((1, c_out, m), lambda b: (b, 0, 0)),
        ),
        compiler_params=pltpu.CompilerParams(
            dimension_semantics=("parallel",)),
    )(w2d, b2d, patches)


# --------------------------- wrapper (layout plumbing) ------------------------

def _patches_grouped(x_bhwc, ksize):
    """(B,H,W,C) -> (B, 4, ksize*ksize*C, (H-k+1)//2 * (W-k+1)//2).

    K index = (kh*ksize + kw)*C + ci ; q axis = (dy, dx) position inside the
    2x2 pooling window ; M index = i*(W_out//2) + j over pooled pixels.
    Pure slicing / transpose (no FLOPs).
    """
    B, H, W, C = x_bhwc.shape
    ho, wo = H - ksize + 1, W - ksize + 1          # VALID conv output extent
    hp, wp = ho // 2, wo // 2                      # after 2x2 max-pool
    cols = jnp.stack([x_bhwc[:, kh:kh + ho, kw:kw + wo, :]
                      for kh in range(ksize) for kw in range(ksize)],
                     axis=-1)                      # (B, ho, wo, C, k*k)
    cols = cols.reshape(B, hp, 2, wp, 2, C, ksize * ksize)
    cols = jnp.transpose(cols, (0, 2, 4, 6, 5, 1, 3))   # (B, 2, 2, k*k, C, hp, wp)
    return cols.reshape(B, 4, ksize * ksize * C, hp * wp)


def cnn_base_forward(x_nchw, params):
    """x_nchw: (B, 3, 64, 64) float32. Returns (B, 20*13*13) like CNNbase."""
    w1, b1, w2, b2 = params      # w1:(10,3,5,5) b1:(10,) w2:(20,10,5,5) b2:(20,)
    B = x_nchw.shape[0]

    x = jnp.transpose(x_nchw, (0, 2, 3, 1)).astype(jnp.float32)   # (B,64,64,3)

    # Flatten weights to (C_out, k*k*C_in) with K index (kh*5+kw)*C_in + ci.
    w1f = jnp.transpose(w1, (0, 2, 3, 1)).reshape(10, 75).astype(jnp.float32)
    w2f = jnp.transpose(w2, (0, 2, 3, 1)).reshape(20, 250).astype(jnp.float32)
    b1f = b1.reshape(10, 1).astype(jnp.float32)
    b2f = b2.reshape(20, 1).astype(jnp.float32)

    # Stage 1: conv1(5x5, 3->10) + maxpool2 + relu.
    p1 = _patches_grouped(x, 5)                      # (B, 4, 75, 900)
    h1 = _conv_pool_relu(w1f, b1f, p1, 10, 900)      # (B, 10, 900) = (B, C, H*W)

    # Stage 2: conv2(5x5, 10->20) + dropout(identity) + maxpool2 + relu.
    h1 = jnp.transpose(h1.reshape(B, 10, 30, 30), (0, 2, 3, 1))   # (B,30,30,10)
    p2 = _patches_grouped(h1, 5)                     # (B, 4, 250, 169)
    out = _conv_pool_relu(w2f, b2f, p2, 20, 169)     # (B, 20, 169)

    # (B, 20, 169) is already (C, H, W)-ordered -> torch.nn.Flatten equivalent.
    return out.reshape(B, 20 * 13 * 13)


# -------------------------- pure-JAX reference (check) ------------------------

def _reference(x, w1, b1, w2, b2):
    dn = ('NCHW', 'OIHW', 'NCHW')
    y = jax.lax.conv_general_dilated(x, w1, (1, 1), 'VALID',
                                     dimension_numbers=dn)
    y = y + b1[None, :, None, None]
    y = jax.lax.reduce_window(y, -jnp.inf, jax.lax.max,
                              (1, 1, 2, 2), (1, 1, 2, 2), 'VALID')
    y = jnp.maximum(y, 0.0)
    y = jax.lax.conv_general_dilated(y, w2, (1, 1), 'VALID',
                                     dimension_numbers=dn)
    y = y + b2[None, :, None, None]
    y = jax.lax.reduce_window(y, -jnp.inf, jax.lax.max,
                              (1, 1, 2, 2), (1, 1, 2, 2), 'VALID')
    y = jnp.maximum(y, 0.0)
    return y.reshape(y.shape[0], -1)


# ----------------------------------- main -------------------------------------

if __name__ == "__main__":
    key = jax.random.PRNGKey(0)
    kx, k1, k2, k3, k4 = jax.random.split(key, 5)

    # Module assumes (B, 3, 64, 64) inputs (see docstring of CNNbase).
    x = jax.random.normal(kx, (2, 3, 64, 64), jnp.float32)

    # Deterministic synthetic parameters (shapes from CNNbase.__init__).
    w1 = 0.1 * jax.random.normal(k1, (10, 3, 5, 5), jnp.float32)
    b1 = 0.1 * jax.random.normal(k2, (10,), jnp.float32)
    w2 = 0.1 * jax.random.normal(k3, (20, 10, 5, 5), jnp.float32)
    b2 = 0.1 * jax.random.normal(k4, (20,), jnp.float32)

    out = cnn_base_forward(x, (w1, b1, w2, b2))
    out = jax.block_until_ready(out)

    assert out.shape == (2, 20 * 13 * 13), out.shape

    ref = jax.block_until_ready(_reference(x, w1, b1, w2, b2))
    # Both paths accumulate in f32 but go through the MXU (bf16 passes), so
    # allow a slightly looser tolerance than exact-f32 math.
    assert jnp.allclose(out, ref, atol=1e-2, rtol=1e-2), \
        float(jnp.max(jnp.abs(out - ref)))

    print("KERNEL_OK")
</pallas_src>

<mosaic_0001>
module attributes {stable_mosaic.version = 11 : i64} {
  func.func @_conv_pool_relu_kernel(%arg0: i32, %arg1: memref<10x75xf32, #tpu.memory_space<vmem>>, %arg2: memref<10x1xf32, #tpu.memory_space<vmem>>, %arg3: memref<1x4x75x900xf32, #tpu.memory_space<vmem>>, %arg4: memref<1x10x900xf32, #tpu.memory_space<vmem>>) attributes {dimension_semantics = [#tpu.dimension_semantics<parallel>], iteration_bounds = array<i64: 2>, scalar_prefetch = 0 : i64, scratch_operands = 0 : i64, tpu.core_type = #tpu.core_type<tc>, window_params = [{pipeline_mode = #tpu.pipeline_mode<synchronous>, transform_indices = @transform_0, window_bounds = array<i64: 10, 75>}, {pipeline_mode = #tpu.pipeline_mode<synchronous>, transform_indices = @transform_1, window_bounds = array<i64: 10, 1>}, {transform_indices = @transform_2, window_bounds = array<i64: 1, 4, 75, 900>}, {transform_indices = @transform_3, window_bounds = array<i64: 1, 10, 900>}]} {
    %c0 = arith.constant 0 : index
    %c0_0 = arith.constant 0 : index
    %0 = vector.load %arg1[%c0, %c0_0] : memref<10x75xf32, #tpu.memory_space<vmem>>, vector<10x75xf32>
    %c0_1 = arith.constant 0 : index
    %c0_2 = arith.constant 0 : index
    %c0_3 = arith.constant 0 : index
    %c0_4 = arith.constant 0 : index
    %1 = vector.load %arg3[%c0_1, %c0_2, %c0_3, %c0_4] : memref<1x4x75x900xf32, #tpu.memory_space<vmem>>, vector<1x1x75x900xf32>
    %2 = vector.shape_cast %1 : vector<1x1x75x900xf32> to vector<75x900xf32>
    %cst = arith.constant dense<0.000000e+00> : vector<10x900xf32>
    %3 = tpu.matmul %0, %2, %cst {dimension_numbers = #tpu.dot_dimension_numbers<[1], [0], [0], [1], [0, 0, 1, 1], [], []>} : vector<10x75xf32>, vector<75x900xf32>, vector<10x900xf32> -> vector<10x900xf32>
    %c0_5 = arith.constant 0 : index
    %c1 = arith.constant 1 : index
    %c0_6 = arith.constant 0 : index
    %c0_7 = arith.constant 0 : index
    %4 = vector.load %arg3[%c0_5, %c1, %c0_6, %c0_7] : memref<1x4x75x900xf32, #tpu.memory_space<vmem>>, vector<1x1x75x900xf32>
    %5 = vector.shape_cast %4 : vector<1x1x75x900xf32> to vector<75x900xf32>
    %cst_8 = arith.constant dense<0.000000e+00> : vector<10x900xf32>
    %6 = tpu.matmul %0, %5, %cst_8 {dimension_numbers = #tpu.dot_dimension_numbers<[1], [0], [0], [1], [0, 0, 1, 1], [], []>} : vector<10x75xf32>, vector<75x900xf32>, vector<10x900xf32> -> vector<10x900xf32>
    %7 = arith.maximumf %3, %6 : vector<10x900xf32>
    %c0_9 = arith.constant 0 : index
    %c2 = arith.constant 2 : index
    %c0_10 = arith.constant 0 : index
    %c0_11 = arith.constant 0 : index
    %8 = vector.load %arg3[%c0_9, %c2, %c0_10, %c0_11] : memref<1x4x75x900xf32, #tpu.memory_space<vmem>>, vector<1x1x75x900xf32>
    %9 = vector.shape_cast %8 : vector<1x1x75x900xf32> to vector<75x900xf32>
    %cst_12 = arith.constant dense<0.000000e+00> : vector<10x900xf32>
    %10 = tpu.matmul %0, %9, %cst_12 {dimension_numbers = #tpu.dot_dimension_numbers<[1], [0], [0], [1], [0, 0, 1, 1], [], []>} : vector<10x75xf32>, vector<75x900xf32>, vector<10x900xf32> -> vector<10x900xf32>
    %11 = arith.maximumf %7, %10 : vector<10x900xf32>
    %c0_13 = arith.constant 0 : index
    %c3 = arith.constant 3 : index
    %c0_14 = arith.constant 0 : index
    %c0_15 = arith.constant 0 : index
    %12 = vector.load %arg3[%c0_13, %c3, %c0_14, %c0_15] : memref<1x4x75x900xf32, #tpu.memory_space<vmem>>, vector<1x1x75x900xf32>
    %13 = vector.shape_cast %12 : vector<1x1x75x900xf32> to vector<75x900xf32>
    %cst_16 = arith.constant dense<0.000000e+00> : vector<10x900xf32>
    %14 = tpu.matmul %0, %13, %cst_16 {dimension_numbers = #tpu.dot_dimension_numbers<[1], [0], [0], [1], [0, 0, 1, 1], [], []>} : vector<10x75xf32>, vector<75x900xf32>, vector<10x900xf32> -> vector<10x900xf32>
    %15 = arith.maximumf %11, %14 : vector<10x900xf32>
    %c0_17 = arith.constant 0 : index
    %c0_18 = arith.constant 0 : index
    %16 = vector.load %arg2[%c0_17, %c0_18] : memref<10x1xf32, #tpu.memory_space<vmem>>, vector<10x1xf32>
    %17 = vector.broadcast %16 : vector<10x1xf32> to vector<10x900xf32>
    %18 = arith.addf %15, %17 : vector<10x900xf32>
    %cst_19 = arith.constant 0.000000e+00 : f32
    %19 = vector.broadcast %cst_19 : f32 to vector<10x900xf32>
    %20 = arith.maximumf %18, %19 : vector<10x900xf32>
    %c0_20 = arith.constant 0 : index
    %c0_21 = arith.constant 0 : index
    %c0_22 = arith.constant 0 : index
    %21 = vector.load %arg4[%c0_20, %c0_21, %c0_22] : memref<1x10x900xf32, #tpu.memory_space<vmem>>, vector<1x10x900xf32>
    %22 = vector.shape_cast %21 : vector<1x10x900xf32> to vector<10x900xf32>
    %23 = vector.shape_cast %20 : vector<10x900xf32> to vector<1x10x900xf32>
    tpu.vector_store %arg4[%c0_20, %c0_21, %c0_22], %23 {strides = array<i32>} : memref<1x10x900xf32, #tpu.memory_space<vmem>>, vector<1x10x900xf32>,
    return
  }
  func.func @transform_0(%arg0: i32) -> (i32, i32) {
    %c0_i32 = arith.constant 0 : i32
    %c0_i32_0 = arith.constant 0 : i32
    %c0_i32_1 = arith.constant 0 : i32
    return %c0_i32, %c0_i32_0 : i32, i32
  }
  func.func @transform_1(%arg0: i32) -> (i32, i32) {
    %c0_i32 = arith.constant 0 : i32
    %c0_i32_0 = arith.constant 0 : i32
    %c0_i32_1 = arith.constant 0 : i32
    return %c0_i32, %c0_i32_0 : i32, i32
  }
  func.func @transform_2(%arg0: i32) -> (i32, i32, i32, i32) {
    %c0_i32 = arith.constant 0 : i32
    %c0_i32_0 = arith.constant 0 : i32
    %c0_i32_1 = arith.constant 0 : i32
    %c0_i32_2 = arith.constant 0 : i32
    return %arg0, %c0_i32, %c0_i32_0, %c0_i32_1 : i32, i32, i32, i32
  }
  func.func @transform_3(%arg0: i32) -> (i32, i32, i32) {
    %c0_i32 = arith.constant 0 : i32
    %c0_i32_0 = arith.constant 0 : i32
    %c0_i32_1 = arith.constant 0 : i32
    return %arg0, %c0_i32, %c0_i32_0 : i32, i32, i32
  }
}

</mosaic_0001>

<llo_original>
// kernel: tpu_custom_call.1
$region0: #{tpu_custom_call.1}
  #allocation0 [shape = 'u32[]', space=smem, size = 0x4, offset = 0x4, fixed_abs, tag = 'smem constant byte address 0x4 - core index']
  #allocation1 [shape = 'u32[144,128]{1,0:T(1,128)}', space=vmem, size = 0x12000, scoped, tag = 'internal scratch']
  %s0 = inlined_call_operand.vmem [shape: f32[10,75], index: 0, kind: input, shape index: {}]
  %s1 = inlined_call_operand.vmem [shape: f32[10,1], index: 1, kind: input, shape index: {}]
  %s2 = inlined_call_operand.vmem [shape: f32[2,4,75,900], index: 2, kind: input, shape index: {}]
  %s3 = inlined_call_operand.vmem [shape: f32[2,10,900], index: 3, kind: output, shape index: {}]
  %s4 = sld [smem:[#allocation0]]
  $region45: #{tpu_custom_call.1} parent=0
    _
  %s6 = ssub.s32 1, %s4
  %s7 = scalar_select 0, %s6, %s4
  loop: start=0, step=1, limit=4
  $region2: #{tpu_custom_call.1} parent=0 // loop_pre_header
    _
  $region3: #{tpu_custom_call.1} parent=0 // loop_header
    %s9 = sphi 0, %s13
    %p10 = scmp.ge.s32.totalorder %s9, 4
    %s17 = sphi 0, %s17
    %s19 = sphi 0, %s17
    %s20 = sphi 0, %s19
    %s34 = sphi 0, %s20
    %s38 = sphi 0, %s38
    %s40 = sphi 0, %s38
    %s41 = sphi 0, %s40
    %s55 = sphi 0, %s41
    %s61 = sphi 0, %s63
    %s64 = sphi 0, %s61
    %s65 = sphi 0, %s64
    %s81 = sphi 0, %s65
    %s87 = sphi 0, %s89
    %s90 = sphi 0, %s87
    %s91 = sphi 0, %s90
    %s107 = sphi 0, %s91
  $region4: #{tpu_custom_call.1} parent=0 // loop_header_branch
    %12 = sbr.rel (%p10) target = $region8
  $region5: #{tpu_custom_call.1} parent=0 // loop_body
    %s14 = ssub.s32 %s9, 1
    %s15 = ssub.s32 %s9, 2
    %s16 = sadd.s32 %s9, 1
    %s18 = sadd.s32 %s17, 1
    %p21 = scmp.eq.s32.totalorder %s9, 1
    %p22 = scmp.ne.s32.totalorder %s17, %s19
    %p23 = scmp.eq.s32.totalorder %s9, 0
    %p24 = por %p22, %p23
    %p25 = scmp.ne.s32.totalorder %s17, %s19
    %p26 = scmp.eq.s32.totalorder %s14, 1
    %p27 = por %p25, %p26
    %p28 = scmp.ne.s32.totalorder %s19, %s20
    %p29 = scmp.eq.s32.totalorder %s14, 0
    %p30 = por %p28, %p29
    %p31 = scmp.ne.s32.totalorder %s19, %s20
    %p32 = scmp.eq.s32.totalorder %s15, 1
    %p33 = por %p31, %p32
    %p35 = scmp.ne.s32.totalorder %s20, %s34
    %p36 = scmp.eq.s32.totalorder %s15, 0
    %p37 = por %p35, %p36
    %s39 = sadd.s32 %s38, 1
    %p42 = scmp.eq.s32.totalorder %s9, 1
    %p43 = scmp.ne.s32.totalorder %s38, %s40
    %p44 = scmp.eq.s32.totalorder %s9, 0
    %p45 = por %p43, %p44
    %p46 = scmp.ne.s32.totalorder %s38, %s40
    %p47 = scmp.eq.s32.totalorder %s14, 1
    %p48 = por %p46, %p47
    %p49 = scmp.ne.s32.totalorder %s40, %s41
    %p50 = scmp.eq.s32.totalorder %s14, 0
    %p51 = por %p49, %p50
    %p52 = scmp.ne.s32.totalorder %s40, %s41
    %p53 = scmp.eq.s32.totalorder %s15, 1
    %p54 = por %p52, %p53
    %p56 = scmp.ne.s32.totalorder %s41, %s55
    %p57 = scmp.eq.s32.totalorder %s15, 0
    %p58 = por %p56, %p57
    %s59 = ssub.s32 %s9, %s16
    %p60 = scmp.eq.s32.totalorder %s59, 0
    %s62 = sadd.s32 %s61, 1
    %s63 = scalar_select %p60, %s61, %s62
    %p66 = pneg %p60
    %p67 = scmp.eq.s32.totalorder %s9, 1
    %p68 = por %p66, %p67
    %p69 = scmp.ne.s32.totalorder %s61, %s64
    %p70 = scmp.eq.s32.totalorder %s9, 0
    %p71 = por %p69, %p70
    %p72 = scmp.ne.s32.totalorder %s61, %s64
    %p73 = scmp.eq.s32.totalorder %s14, 1
    %p74 = por %p72, %p73
    %p75 = scmp.ne.s32.totalorder %s64, %s65
    %p76 = scmp.eq.s32.totalorder %s14, 0
    %p77 = por %p75, %p76
    %p78 = scmp.ne.s32.totalorder %s64, %s65
    %p79 = scmp.eq.s32.totalorder %s15, 1
    %p80 = por %p78, %p79
    %p82 = scmp.ne.s32.totalorder %s65, %s81
    %p83 = scmp.eq.s32.totalorder %s15, 0
    %p84 = por %p82, %p83
    %s85 = ssub.s32 %s9, %s16
    %p86 = scmp.eq.s32.totalorder %s85, 0
    %s88 = sadd.s32 %s87, 1
    %s89 = scalar_select %p86, %s87, %s88
    %p92 = pneg %p86
    %p93 = scmp.eq.s32.totalorder %s9, 1
    %p94 = por %p92, %p93
    %p95 = scmp.ne.s32.totalorder %s87, %s90
    %p96 = scmp.eq.s32.totalorder %s9, 0
    %p97 = por %p95, %p96
    %p98 = scmp.ne.s32.totalorder %s87, %s90
    %p99 = scmp.eq.s32.totalorder %s14, 1
    %p100 = por %p98, %p99
    %p101 = scmp.ne.s32.totalorder %s90, %s91
    %p102 = scmp.eq.s32.totalorder %s14, 0
    %p103 = por %p101, %p102
    %p104 = scmp.ne.s32.totalorder %s90, %s91
    %p105 = scmp.eq.s32.totalorder %s15, 1
    %p106 = por %p104, %p105
    %p108 = scmp.ne.s32.totalorder %s91, %s107
    %p109 = scmp.eq.s32.totalorder %s15, 0
    %p110 = por %p108, %p109
    %p111 = scmp.le.s32.totalorder 1, %s9
    %p112 = scmp.lt.s32.totalorder %s9, 3
    %p113 = pnand %p111, %p112
    %p114 = pneg %p113
    // Predicated region
    $region9: #{tpu_custom_call.1} parent=5 // pred_check
      _
    $region10: #{tpu_custom_call.1} parent=5 // pred_check_branch
      %116 = sbr.rel (%p113) target = $region12
    $region11: #{tpu_custom_call.1} parent=5 // pred_region
      %s117 = ssub.s32 %s9, 1
      // Predicated region
      $region13: #{tpu_custom_call.1} parent=11 // pred_check
        %p118 = pneg %p30
      $region14: #{tpu_custom_call.1} parent=11 // pred_check_branch
        %120 = sbr.rel (%p118) target = $region16
      $region15: #{tpu_custom_call.1} parent=11 // pred_region
        _
      $region16: #{tpu_custom_call.1} parent=11 // pred_fallthru
        _
      // Predicated region
      $region17: #{tpu_custom_call.1} parent=11 // pred_check
        %p121 = pneg %p51
      $region18: #{tpu_custom_call.1} parent=11 // pred_check_branch
        %123 = sbr.rel (%p121) target = $region20
      $region19: #{tpu_custom_call.1} parent=11 // pred_region
        _
      $region20: #{tpu_custom_call.1} parent=11 // pred_fallthru
        _
    $region12: #{tpu_custom_call.1} parent=5 // pred_fallthru
      _
    %p124 = scmp.lt.s32.totalorder %s9, 2
    // Predicated region
    $region21: #{tpu_custom_call.1} parent=5 // pred_check
      %p125 = pneg %p124
    $region22: #{tpu_custom_call.1} parent=5 // pred_check_branch
      %127 = sbr.rel (%p125) target = $region24
    $region23: #{tpu_custom_call.1} parent=5 // pred_region
      // Predicated region
      $region25: #{tpu_custom_call.1} parent=23 // pred_check
        %p128 = pneg %p71
      $region26: #{tpu_custom_call.1} parent=23 // pred_check_branch
        %130 = sbr.rel (%p128) target = $region28
      $region27: #{tpu_custom_call.1} parent=23 // pred_region
        %p131 = scmp.lt.s32.totalorder %s9, 1
        %s132 = scalar_select %p131, %s9, 1
        %s133 = smul.addr %s132, 320
        %s134 = smul.addr %s133, 8
        %s135 = scalar_lea.vmem %s2, %s134
      $region28: #{tpu_custom_call.1} parent=23 // pred_fallthru
        _
    $region24: #{tpu_custom_call.1} parent=5 // pred_fallthru
      _
    %p136 = scmp.le.s32.totalorder 1, %s9
    %p137 = scmp.lt.s32.totalorder %s9, 3
    %p138 = pnand %p136, %p137
    %p139 = pneg %p138
    // Predicated region
    $region29: #{tpu_custom_call.1} parent=5 // pred_check
      _
    $region30: #{tpu_custom_call.1} parent=5 // pred_check_branch
      %141 = sbr.rel (%p138) target = $region32
    $region31: #{tpu_custom_call.1} parent=5 // pred_region
      %s142 = ssub.s32 %s9, 1
      %p143 = pneg %p30
      %p144 = pneg %p27
      %p145 = pneg %p51
      %p146 = pneg %p48
      %p147 = scmp.lt.s32.totalorder %s14, 1
      %s148 = scalar_select %p147, %s14, 1
      %s149 = smul.addr %s148, 320
      %s150 = smul.addr %s149, 8
      %s151 = scalar_lea.vmem %s2, %s150
      %p152 = pneg %p77
      %p153 = pneg %p74
      %p154 = pneg %p103
      %p155 = pneg %p100
      %p156 = scmp.lt.s32.totalorder %s14, 1
      %s157 = scalar_select %p156, %s14, 1
      %s158 = smul.addr %s157, 16
      %s159 = smul.addr %s158, 8
      %s160 = scalar_lea.vmem %s3, %s159
      %p161 = scmp.lt.s32.totalorder %s14, 1
      %s162 = scalar_select %p161, %s14, 1
      %s163 = smul.addr %s162, 320
      %s164 = smul.addr %s163, 8
      %s165 = scalar_lea.vmem %s2, %s164
      %p166 = scmp.lt.s32.totalorder %s14, 1
      %s167 = scalar_select %p166, %s14, 1
      %s168 = smul.addr %s167, 16
      %s169 = smul.addr %s168, 8
      %s170 = scalar_lea.vmem %s3, %s169
      %v171 = vld [vmem:[%s0] sm:$0xff]
      %v172 = vld [vmem:[%s0 + $0x8] sm:$0x3]
      %v173 = vld [vmem:[%s165] sm:$0xff]
      %v174 = vld [vmem:[%s165 + $0x8] sm:$0xff]
      %v175 = vld [vmem:[%s165 + $0x10] sm:$0xff]
      %v176 = vld [vmem:[%s165 + $0x18] sm:$0xff]
      %v177 = vld [vmem:[%s165 + $0x20] sm:$0xff]
      %v178 = vld [vmem:[%s165 + $0x28] sm:$0xff]
      %v179 = vld [vmem:[%s165 + $0x30] sm:$0xff]
      %v180 = vld [vmem:[%s165 + $0x38] sm:$0xff]
      %v181 = vld [vmem:[%s165 + $0x40] sm:$0xff]
      %v182 = vld [vmem:[%s165 + $0x48] sm:$0xff]
      %v183 = vld [vmem:[%s165 + $0x50] sm:$0xff]
      %v184 = vld [vmem:[%s165 + $0x58] sm:$0xff]
      %v185 = vld [vmem:[%s165 + $0x60] sm:$0xff]
      %v186 = vld [vmem:[%s165 + $0x68] sm:$0xff]
      %v187 = vld [vmem:[%s165 + $0x70] sm:$0xff]
      %v188 = vld [vmem:[%s165 + $0x78] sm:$0xff]
      %v189 = vld [vmem:[%s165 + $0x80] sm:$0xff]
      %v190 = vld [vmem:[%s165 + $0x88] sm:$0xff]
      %v191 = vld [vmem:[%s165 + $0x90] sm:$0xff]
      %v192 = vld [vmem:[%s165 + $0x98] sm:$0xff]
      %v193 = vld [vmem:[%s165 + $0xa0] sm:$0xff]
      %v194 = vld [vmem:[%s165 + $0xa8] sm:$0xff]
      %v195 = vld [vmem:[%s165 + $0xb0] sm:$0xff]
      %v196 = vld [vmem:[%s165 + $0xb8] sm:$0xff]
      %v197 = vld [vmem:[%s165 + $0xc0] sm:$0xff]
      %v198 = vld [vmem:[%s165 + $0xc8] sm:$0xff]
      %v199 = vld [vmem:[%s165 + $0xd0] sm:$0xff]
      %v200 = vld [vmem:[%s165 + $0xd8] sm:$0xff]
      %v201 = vld [vmem:[%s165 + $0xe0] sm:$0xff]
      %v202 = vld [vmem:[%s165 + $0xe8] sm:$0xff]
      %v203 = vld [vmem:[%s165 + $0xf0] sm:$0xff]
      %v204 = vld [vmem:[%s165 + $0xf8] sm:$0xff]
      %v205 = vld [vmem:[%s165 + $0x100] sm:$0xff]
      %v206 = vld [vmem:[%s165 + $0x108] sm:$0xff]
      %v207 = vld [vmem:[%s165 + $0x110] sm:$0xff]
      %v208 = vld [vmem:[%s165 + $0x118] sm:$0xff]
      %v209 = vld [vmem:[%s165 + $0x120] sm:$0xff]
      %v210 = vld [vmem:[%s165 + $0x128] sm:$0xff]
      %v211 = vld [vmem:[%s165 + $0x130] sm:$0xff]
      %v212 = vld [vmem:[%s165 + $0x138] sm:$0xff]
      %v213 = vld [vmem:[%s165 + $0x140] sm:$0xff]
      %v214 = vld [vmem:[%s165 + $0x148] sm:$0xff]
      %v215 = vld [vmem:[%s165 + $0x150] sm:$0xff]
      %v216 = vld [vmem:[%s165 + $0x158] sm:$0xff]
      %v217 = vld [vmem:[%s165 + $0x160] sm:$0xff]
      %v218 = vld [vmem:[%s165 + $0x168] sm:$0xff]
      %v219 = vld [vmem:[%s165 + $0x170] sm:$0xff]
      %v220 = vld [vmem:[%s165 + $0x178] sm:$0xff]
      %v221 = vld [vmem:[%s165 + $0x180] sm:$0xff]
      %v222 = vld [vmem:[%s165 + $0x188] sm:$0xff]
      %v223 = vld [vmem:[%s165 + $0x190] sm:$0xff]
      %v224 = vld [vmem:[%s165 + $0x198] sm:$0xff]
      %v225 = vld [vmem:[%s165 + $0x1a0] sm:$0xff]
      %v226 = vld [vmem:[%s165 + $0x1a8] sm:$0xff]
      %v227 = vld [vmem:[%s165 + $0x1b0] sm:$0xff]
      %v228 = vld [vmem:[%s165 + $0x1b8] sm:$0xff]
      %v229 = vld [vmem:[%s165 + $0x1c0] sm:$0xff]
      %v230 = vld [vmem:[%s165 + $0x1c8] sm:$0xff]
      %v231 = vld [vmem:[%s165 + $0x1d0] sm:$0xff]
      %v232 = vld [vmem:[%s165 + $0x1d8] sm:$0xff]
      %v233 = vld [vmem:[%s165 + $0x1e0] sm:$0xff]
      %v234 = vld [vmem:[%s165 + $0x1e8] sm:$0xff]
      %v235 = vld [vmem:[%s165 + $0x1f0] sm:$0xff]
      %v236 = vld [vmem:[%s165 + $0x1f8] sm:$0xff]
      %v237 = vld [vmem:[%s165 + $0x200] sm:$0xff]
      %v238 = vld [vmem:[%s165 + $0x208] sm:$0xff]
      %v239 = vld [vmem:[%s165 + $0x210] sm:$0xff]
      %v240 = vld [vmem:[%s165 + $0x218] sm:$0xff]
      %v241 = vld [vmem:[%s165 + $0x220] sm:$0xff]
      %v242 = vld [vmem:[%s165 + $0x228] sm:$0xff]
      %v243 = vld [vmem:[%s165 + $0x230] sm:$0xff]
      %v244 = vld [vmem:[%s165 + $0x238] sm:$0xff]
      %v245 = vld [vmem:[%s165 + $0x240] sm:$0x7]
      %v246 = vld [vmem:[%s165 + $0x248] sm:$0x7]
      %v247 = vld [vmem:[%s165 + $0x250] sm:$0x7]
      %v248 = vld [vmem:[%s165 + $0x258] sm:$0x7]
      %v249 = vld [vmem:[%s165 + $0x260] sm:$0x7]
      %v250 = vld [vmem:[%s165 + $0x268] sm:$0x7]
      %v251 = vld [vmem:[%s165 + $0x270] sm:$0x7]
      %v252 = vld [vmem:[%s165 + $0x278] sm:$0x7]
      %vm253 = vcmask 613376
      %v255 = vsel %vm253, %v171, 0
      %v258 = vsel %vm253, %v172, 0
      %vm260 = vcmask 1042432
      %v262 = vsel %vm260, %v245, 0
      %v265 = vsel %vm260, %v246, 0
      %v268 = vsel %vm260, %v247, 0
      %v271 = vsel %vm260, %v248, 0
      %v274 = vsel %vm260, %v249, 0
      %v277 = vsel %vm260, %v250, 0
      %v280 = vsel %vm260, %v251, 0
      %v283 = vsel %vm260, %v252, 0
      %285 = vmatprep.subr.mxu0 %v174
      %286 = vmatpush1.msra.mxu0 %v173
      %287 = vmatprep.subr.mxu0 %v182
      %288 = vmatpush1.msra.mxu0 %v181
      %289 = vmatprep.subr.mxu0 %v190
      %290 = vmatpush1.msra.mxu0 %v189
      %291 = vmatprep.subr.mxu0 %v198
      %292 = vmatpush1.msra.mxu0 %v197
      %293 = vmatprep.subr.mxu0 %v206
      %294 = vmatpush1.msra.mxu0 %v205
      %295 = vmatprep.subr.mxu0 %v214
      %296 = vmatpush1.msra.mxu0 %v213
      %297 = vmatprep.subr.mxu0 %v222
      %298 = vmatpush1.msra.mxu0 %v221
      %299 = vmatprep.subr.mxu0 %v230
      %300 = vmatpush1.msra.mxu0 %v229
      %301 = vmatprep.subr.mxu0 %v238
      %302 = vmatpush1.msra.mxu0 %v237
      %303 = vmatprep.subr.mxu0 %v265
      %304 = vmatpush1.msra.mxu0 %v262
      %305 = vmatprep.subr.mxu0 0.0
      %306 = vmatpush1.msra.mxu0 0.0
      %307 = vmatprep.subr.mxu0 0.0
      %308 = vmatpush1.msra.mxu0 0.0
      %309 = vmatprep.subr.mxu0 0.0
      %310 = vmatpush1.msra.mxu0 0.0
      %311 = vmatprep.subr.mxu0 0.0
      %312 = vmatpush1.msra.mxu0 0.0
      %313 = vmatprep.subr.mxu0 0.0
      %314 = vmatpush1.msra.mxu0 0.0
      %315 = vmatprep.subr.mxu0 0.0
      %316 = vmatpush1.msra.mxu0 0.0
      %317 = vmatprep.subr.mxu0 0.0
      %318 = vmatpush1.msra.mxu0 0.0
      %319 = vmatprep.subr.mxu0 0.0
      %320 = vmatpush1.msra.mxu0 0.0
      %321 = vmatprep.subr.mxu0 0.0
      %322 = vmatpush1.msra.mxu0 0.0
      %323 = vmatprep.subr.mxu0 0.0
      %324 = vmatpush1.msra.mxu0 0.0
      %325 = vmatprep.subr.mxu0 0.0
      %326 = vmatpush1.msra.mxu0 0.0
      %327 = vmatprep.subr.mxu0 0.0
      %328 = vmatpush1.msra.mxu0 0.0
      %329 = vmatprep.subr.mxu0 0.0
      %330 = vmatpush1.msra.mxu0 0.0
      %331 = vmatprep.subr.mxu0 0.0
      %332 = vmatpush1.msra.mxu0 0.0
      %333 = vmatprep.subr.mxu0 0.0
      %334 = vmatpush1.msra.mxu0 0.0
      %335 = vmatprep.subr.mxu0 0.0
      %336 = vmatpush1.msra.mxu0 0.0
      %337 = vmatprep.subr.mxu0 0.0
      %338 = vmatpush1.msra.mxu0 0.0
      %339 = vmatprep.subr.mxu0 0.0
      %340 = vmatpush1.msra.mxu0 0.0
      %341 = vmatprep.subr.mxu0 0.0
      %342 = vmatpush1.msra.mxu0 0.0
      %343 = vmatprep.subr.mxu0 0.0
      %344 = vmatpush1.msra.mxu0 0.0
      %345 = vmatprep.subr.mxu0 0.0
      %346 = vmatpush1.msra.mxu0 0.0
      %347 = vmatprep.subr.mxu0 0.0
      %348 = vmatpush1.msra.mxu0 0.0
      %349 = vmatprep.mubr.f32.mxu0 0.0
      %350 = vmatmul.mubr.f32.gmra.mrb[0].mxu0 %v255
      %v351 = vpop.f32.mrb[0].mxu0
      %v352 = vadd.f32 0.0, %v351
      %v353 = vpop.f32.mrb[0].mxu0
      %v354 = vadd.f32 0.0, %v353
      %355 = vmatprep.mubr.f32.mxu0 0.0
      %356 = vmatmul.mubr.f32.gmra.mrb[0].mxu0 %v258
      %v357 = vpop.f32.mrb[0].mxu0
      %v358 = vadd.f32 0.0, %v357
      %v359 = vpop.f32.mrb[0].mxu0
      %v360 = vadd.f32 0.0, %v359
      %361 = vdwg.mxu0
      %362 = vmatprep.subr.mxu0 %v176
      %363 = vmatpush1.msra.mxu0 %v175
      %364 = vmatprep.subr.mxu0 %v184
      %365 = vmatpush1.msra.mxu0 %v183
      %366 = vmatprep.subr.mxu0 %v192
      %367 = vmatpush1.msra.mxu0 %v191
      %368 = vmatprep.subr.mxu0 %v200
      %369 = vmatpush1.msra.mxu0 %v199
      %370 = vmatprep.subr.mxu0 %v208
      %371 = vmatpush1.msra.mxu0 %v207
      %372 = vmatprep.subr.mxu0 %v216
      %373 = vmatpush1.msra.mxu0 %v215
      %374 = vmatprep.subr.mxu0 %v224
      %375 = vmatpush1.msra.mxu0 %v223
      %376 = vmatprep.subr.mxu0 %v232
      %377 = vmatpush1.msra.mxu0 %v231
      %378 = vmatprep.subr.mxu0 %v240
      %379 = vmatpush1.msra.mxu0 %v239
      %380 = vmatprep.subr.mxu0 %v271
      %381 = vmatpush1.msra.mxu0 %v268
      %382 = vmatprep.subr.mxu0 0.0
      %383 = vmatpush1.msra.mxu0 0.0
      %384 = vmatprep.subr.mxu0 0.0
      %385 = vmatpush1.msra.mxu0 0.0
      %386 = vmatprep.subr.mxu0 0.0
      %387 = vmatpush1.msra.mxu0 0.0
      %388 = vmatprep.subr.mxu0 0.0
      %389 = vmatpush1.msra.mxu0 0.0
      %390 = vmatprep.subr.mxu0 0.0
      %391 = vmatpush1.msra.mxu0 0.0
      %392 = vmatprep.subr.mxu0 0.0
      %393 = vmatpush1.msra.mxu0 0.0
      %394 = vmatprep.subr.mxu0 0.0
      %395 = vmatpush1.msra.mxu0 0.0
      %396 = vmatprep.subr.mxu0 0.0
      %397 = vmatpush1.msra.mxu0 0.0
      %398 = vmatprep.subr.mxu0 0.0
      %399 = vmatpush1.msra.mxu0 0.0
      %400 = vmatprep.subr.mxu0 0.0
      %401 = vmatpush1.msra.mxu0 0.0
      %402 = vmatprep.subr.mxu0 0.0
      %403 = vmatpush1.msra.mxu0 0.0
      %404 = vmatprep.subr.mxu0 0.0
      %405 = vmatpush1.msra.mxu0 0.0
      %406 = vmatprep.subr.mxu0 0.0
      %407 = vmatpush1.msra.mxu0 0.0
      %408 = vmatprep.subr.mxu0 0.0
      %409 = vmatpush1.msra.mxu0 0.0
      %410 = vmatprep.subr.mxu0 0.0
      %411 = vmatpush1.msra.mxu0 0.0
      %412 = vmatprep.subr.mxu0 0.0
      %413 = vmatpush1.msra.mxu0 0.0
      %414 = vmatprep.subr.mxu0 0.0
      %415 = vmatpush1.msra.mxu0 0.0
      %416 = vmatprep.subr.mxu0 0.0
      %417 = vmatpush1.msra.mxu0 0.0
      %418 = vmatprep.subr.mxu0 0.0
      %419 = vmatpush1.msra.mxu0 0.0
      %420 = vmatprep.subr.mxu0 0.0
      %421 = vmatpush1.msra.mxu0 0.0
      %422 = vmatprep.subr.mxu0 0.0
      %423 = vmatpush1.msra.mxu0 0.0
      %424 = vmatprep.subr.mxu0 0.0
      %425 = vmatpush1.msra.mxu0 0.0
      %426 = vmatprep.mubr.f32.mxu0 0.0
      %427 = vmatmul.mubr.f32.gmra.mrb[0].mxu0 %v255
      %v428 = vpop.f32.mrb[0].mxu0
      %v429 = vadd.f32 0.0, %v428
      %v430 = vpop.f32.mrb[0].mxu0
      %v431 = vadd.f32 0.0, %v430
      %432 = vmatprep.mubr.f32.mxu0 0.0
      %433 = vmatmul.mubr.f32.gmra.mrb[0].mxu0 %v258
      %v434 = vpop.f32.mrb[0].mxu0
      %v435 = vadd.f32 0.0, %v434
      %v436 = vpop.f32.mrb[0].mxu0
      %v437 = vadd.f32 0.0, %v436
      %438 = vdwg.mxu0
      %439 = vmatprep.subr.mxu0 %v178
      %440 = vmatpush1.msra.mxu0 %v177
      %441 = vmatprep.subr.mxu0 %v186
      %442 = vmatpush1.msra.mxu0 %v185
      %443 = vmatprep.subr.mxu0 %v194
      %444 = vmatpush1.msra.mxu0 %v193
      %445 = vmatprep.subr.mxu0 %v202
      %446 = vmatpush1.msra.mxu0 %v201
      %447 = vmatprep.subr.mxu0 %v210
      %448 = vmatpush1.msra.mxu0 %v209
      %449 = vmatprep.subr.mxu0 %v218
      %450 = vmatpush1.msra.mxu0 %v217
      %451 = vmatprep.subr.mxu0 %v226
      %452 = vmatpush1.msra.mxu0 %v225
      %453 = vmatprep.subr.mxu0 %v234
      %454 = vmatpush1.msra.mxu0 %v233
      %455 = vmatprep.subr.mxu0 %v242
      %456 = vmatpush1.msra.mxu0 %v241
      %457 = vmatprep.subr.mxu0 %v277
      %458 = vmatpush1.msra.mxu0 %v274
      %459 = vmatprep.subr.mxu0 0.0
      %460 = vmatpush1.msra.mxu0 0.0
      %461 = vmatprep.subr.mxu0 0.0
      %462 = vmatpush1.msra.mxu0 0.0
      %463 = vmatprep.subr.mxu0 0.0
      %464 = vmatpush1.msra.mxu0 0.0
      %465 = vmatprep.subr.mxu0 0.0
      %466 = vmatpush1.msra.mxu0 0.0
      %467 = vmatprep.subr.mxu0 0.0
      %468 = vmatpush1.msra.mxu0 0.0
      %469 = vmatprep.subr.mxu0 0.0
      %470 = vmatpush1.msra.mxu0 0.0
      %471 = vmatprep.subr.mxu0 0.0
      %472 = vmatpush1.msra.mxu0 0.0
      %473 = vmatprep.subr.mxu0 0.0
      %474 = vmatpush1.msra.mxu0 0.0
      %475 = vmatprep.subr.mxu0 0.0
      %476 = vmatpush1.msra.mxu0 0.0
      %477 = vmatprep.subr.mxu0 0.0
      %478 = vmatpush1.msra.mxu0 0.0
      %479 = vmatprep.subr.mxu0 0.0
      %480 = vmatpush1.msra.mxu0 0.0
      %481 = vmatprep.subr.mxu0 0.0
      %482 = vmatpush1.msra.mxu0 0.0
      %483 = vmatprep.subr.mxu0 0.0
      %484 = vmatpush1.msra.mxu0 0.0
      %485 = vmatprep.subr.mxu0 0.0
      %486 = vmatpush1.msra.mxu0 0.0
      %487 = vmatprep.subr.mxu0 0.0
      %488 = vmatpush1.msra.mxu0 0.0
      %489 = vmatprep.subr.mxu0 0.0
      %490 = vmatpush1.msra.mxu0 0.0
      %491 = vmatprep.subr.mxu0 0.0
      %492 = vmatpush1.msra.mxu0 0.0
      %493 = vmatprep.subr.mxu0 0.0
      %494 = vmatpush1.msra.mxu0 0.0
      %495 = vmatprep.subr.mxu0 0.0
      %496 = vmatpush1.msra.mxu0 0.0
      %497 = vmatprep.subr.mxu0 0.0
      %498 = vmatpush1.msra.mxu0 0.0
      %499 = vmatprep.subr.mxu0 0.0
      %500 = vmatpush1.msra.mxu0 0.0
      %501 = vmatprep.subr.mxu0 0.0
      %502 = vmatpush1.msra.mxu0 0.0
      %503 = vmatprep.mubr.f32.mxu0 0.0
      %504 = vmatmul.mubr.f32.gmra.mrb[0].mxu0 %v255
      %v505 = vpop.f32.mrb[0].mxu0
      %v506 = vadd.f32 0.0, %v505
      %v507 = vpop.f32.mrb[0].mxu0
      %v508 = vadd.f32 0.0, %v507
      %509 = vmatprep.mubr.f32.mxu0 0.0
      %510 = vmatmul.mubr.f32.gmra.mrb[0].mxu0 %v258
      %v511 = vpop.f32.mrb[0].mxu0
      %v512 = vadd.f32 0.0, %v511
      %v513 = vpop.f32.mrb[0].mxu0
      %v514 = vadd.f32 0.0, %v513
      %515 = vdwg.mxu0
      %516 = vmatprep.subr.mxu0 %v180
      %517 = vmatpush1.msra.mxu0 %v179
      %518 = vmatprep.subr.mxu0 %v188
      %519 = vmatpush1.msra.mxu0 %v187
      %520 = vmatprep.subr.mxu0 %v196
      %521 = vmatpush1.msra.mxu0 %v195
      %522 = vmatprep.subr.mxu0 %v204
      %523 = vmatpush1.msra.mxu0 %v203
      %524 = vmatprep.subr.mxu0 %v212
      %525 = vmatpush1.msra.mxu0 %v211
      %526 = vmatprep.subr.mxu0 %v220
      %527 = vmatpush1.msra.mxu0 %v219
      %528 = vmatprep.subr.mxu0 %v228
      %529 = vmatpush1.msra.mxu0 %v227
      %530 = vmatprep.subr.mxu0 %v236
      %531 = vmatpush1.msra.mxu0 %v235
      %532 = vmatprep.subr.mxu0 %v244
      %533 = vmatpush1.msra.mxu0 %v243
      %534 = vmatprep.subr.mxu0 %v283
      %535 = vmatpush1.msra.mxu0 %v280
      %536 = vmatprep.subr.mxu0 0.0
      %537 = vmatpush1.msra.mxu0 0.0
      %538 = vmatprep.subr.mxu0 0.0
      %539 = vmatpush1.msra.mxu0 0.0
      %540 = vmatprep.subr.mxu0 0.0
      %541 = vmatpush1.msra.mxu0 0.0
      %542 = vmatprep.subr.mxu0 0.0
      %543 = vmatpush1.msra.mxu0 0.0
      %544 = vmatprep.subr.mxu0 0.0
      %545 = vmatpush1.msra.mxu0 0.0
      %546 = vmatprep.subr.mxu0 0.0
      %547 = vmatpush1.msra.mxu0 0.0
      %548 = vmatprep.subr.mxu0 0.0
      %549 = vmatpush1.msra.mxu0 0.0
      %550 = vmatprep.subr.mxu0 0.0
      %551 = vmatpush1.msra.mxu0 0.0
      %552 = vmatprep.subr.mxu0 0.0
      %553 = vmatpush1.msra.mxu0 0.0
      %554 = vmatprep.subr.mxu0 0.0
      %555 = vmatpush1.msra.mxu0 0.0
      %556 = vmatprep.subr.mxu0 0.0
      %557 = vmatpush1.msra.mxu0 0.0
      %558 = vmatprep.subr.mxu0 0.0
      %559 = vmatpush1.msra.mxu0 0.0
      %560 = vmatprep.subr.mxu0 0.0
      %561 = vmatpush1.msra.mxu0 0.0
      %562 = vmatprep.subr.mxu0 0.0
      %563 = vmatpush1.msra.mxu0 0.0
      %564 = vmatprep.subr.mxu0 0.0
      %565 = vmatpush1.msra.mxu0 0.0
      %566 = vmatprep.subr.mxu0 0.0
      %567 = vmatpush1.msra.mxu0 0.0
      %568 = vmatprep.subr.mxu0 0.0
      %569 = vmatpush1.msra.mxu0 0.0
      %570 = vmatprep.subr.mxu0 0.0
      %571 = vmatpush1.msra.mxu0 0.0
      %572 = vmatprep.subr.mxu0 0.0
      %573 = vmatpush1.msra.mxu0 0.0
      %574 = vmatprep.subr.mxu0 0.0
      %575 = vmatpush1.msra.mxu0 0.0
      %576 = vmatprep.subr.mxu0 0.0
      %577 = vmatpush1.msra.mxu0 0.0
      %578 = vmatprep.subr.mxu0 0.0
      %579 = vmatpush1.msra.mxu0 0.0
      %580 = vmatprep.mubr.f32.mxu0 0.0
      %581 = vmatmul.mubr.f32.gmra.mrb[0].mxu0 %v255
      %v582 = vpop.f32.mrb[0].mxu0
      %v583 = vadd.f32 0.0, %v582
      %v584 = vpop.f32.mrb[0].mxu0
      %v585 = vadd.f32 0.0, %v584
      %586 = vmatprep.mubr.f32.mxu0 0.0
      %587 = vmatmul.mubr.f32.gmra.mrb[0].mxu0 %v258
      %v588 = vpop.f32.mrb[0].mxu0
      %v589 = vadd.f32 0.0, %v588
      %v590 = vpop.f32.mrb[0].mxu0
      %v591 = vadd.f32 0.0, %v590
      %592 = vdwg.mxu0
      %s593 = scalar_lea.vmem %s165, 640
      %v594 = vld [vmem:[%s593] sm:$0xff]
      %v595 = vld [vmem:[%s593 + $0x8] sm:$0xff]
      %v596 = vld [vmem:[%s593 + $0x10] sm:$0xff]
      %v597 = vld [vmem:[%s593 + $0x18] sm:$0xff]
      %v598 = vld [vmem:[%s593 + $0x20] sm:$0xff]
      %v599 = vld [vmem:[%s593 + $0x28] sm:$0xff]
      %v600 = vld [vmem:[%s593 + $0x30] sm:$0xff]
      %v601 = vld [vmem:[%s593 + $0x38] sm:$0xff]
      %v602 = vld [vmem:[%s593 + $0x40] sm:$0xff]
      %v603 = vld [vmem:[%s593 + $0x48] sm:$0xff]
      %v604 = vld [vmem:[%s593 + $0x50] sm:$0xff]
      %v605 = vld [vmem:[%s593 + $0x58] sm:$0xff]
      %v606 = vld [vmem:[%s593 + $0x60] sm:$0xff]
      %v607 = vld [vmem:[%s593 + $0x68] sm:$0xff]
      %v608 = vld [vmem:[%s593 + $0x70] sm:$0xff]
      %v609 = vld [vmem:[%s593 + $0x78] sm:$0xff]
      %v610 = vld [vmem:[%s593 + $0x80] sm:$0xff]
      %v611 = vld [vmem:[%s593 + $0x88] sm:$0xff]
      %v612 = vld [vmem:[%s593 + $0x90] sm:$0xff]
      %v613 = vld [vmem:[%s593 + $0x98] sm:$0xff]
      %v614 = vld [vmem:[%s593 + $0xa0] sm:$0xff]
      %v615 = vld [vmem:[%s593 + $0xa8] sm:$0xff]
      %v616 = vld [vmem:[%s593 + $0xb0] sm:$0xff]
      %v617 = vld [vmem:[%s593 + $0xb8] sm:$0xff]
      %v618 = vld [vmem:[%s593 + $0xc0] sm:$0xff]
      %v619 = vld [vmem:[%s593 + $0xc8] sm:$0xff]
      %v620 = vld [vmem:[%s593 + $0xd0] sm:$0xff]
      %v621 = vld [vmem:[%s593 + $0xd8] sm:$0xff]
      %v622 = vld [vmem:[%s593 + $0xe0] sm:$0xff]
      %v623 = vld [vmem:[%s593 + $0xe8] sm:$0xff]
      %v624 = vld [vmem:[%s593 + $0xf0] sm:$0xff]
      %v625 = vld [vmem:[%s593 + $0xf8] sm:$0xff]
      %v626 = vld [vmem:[%s593 + $0x100] sm:$0xff]
      %v627 = vld [vmem:[%s593 + $0x108] sm:$0xff]
      %v628 = vld [vmem:[%s593 + $0x110] sm:$0xff]
      %v629 = vld [vmem:[%s593 + $0x118] sm:$0xff]
      %v630 = vld [vmem:[%s593 + $0x120] sm:$0xff]
      %v631 = vld [vmem:[%s593 + $0x128] sm:$0xff]
      %v632 = vld [vmem:[%s593 + $0x130] sm:$0xff]
      %v633 = vld [vmem:[%s593 + $0x138] sm:$0xff]
      %v634 = vld [vmem:[%s593 + $0x140] sm:$0xff]
      %v635 = vld [vmem:[%s593 + $0x148] sm:$0xff]
      %v636 = vld [vmem:[%s593 + $0x150] sm:$0xff]
      %v637 = vld [vmem:[%s593 + $0x158] sm:$0xff]
      %v638 = vld [vmem:[%s593 + $0x160] sm:$0xff]
      %v639 = vld [vmem:[%s593 + $0x168] sm:$0xff]
      %v640 = vld [vmem:[%s593 + $0x170] sm:$0xff]
      %v641 = vld [vmem:[%s593 + $0x178] sm:$0xff]
      %v642 = vld [vmem:[%s593 + $0x180] sm:$0xff]
      %v643 = vld [vmem:[%s593 + $0x188] sm:$0xff]
      %v644 = vld [vmem:[%s593 + $0x190] sm:$0xff]
      %v645 = vld [vmem:[%s593 + $0x198] sm:$0xff]
      %v646 = vld [vmem:[%s593 + $0x1a0] sm:$0xff]
      %v647 = vld [vmem:[%s593 + $0x1a8] sm:$0xff]
      %v648 = vld [vmem:[%s593 + $0x1b0] sm:$0xff]
      %v649 = vld [vmem:[%s593 + $0x1b8] sm:$0xff]
      %v650 = vld [vmem:[%s593 + $0x1c0] sm:$0xff]
      %v651 = vld [vmem:[%s593 + $0x1c8] sm:$0xff]
      %v652 = vld [vmem:[%s593 + $0x1d0] sm:$0xff]
      %v653 = vld [vmem:[%s593 + $0x1d8] sm:$0xff]
      %v654 = vld [vmem:[%s593 + $0x1e0] sm:$0xff]
      %v655 = vld [vmem:[%s593 + $0x1e8] sm:$0xff]
      %v656 = vld [vmem:[%s593 + $0x1f0] sm:$0xff]
      %v657 = vld [vmem:[%s593 + $0x1f8] sm:$0xff]
      %v658 = vld [vmem:[%s593 + $0x200] sm:$0xff]
      %v659 = vld [vmem:[%s593 + $0x208] sm:$0xff]
      %v660 = vld [vmem:[%s593 + $0x210] sm:$0xff]
      %v661 = vld [vmem:[%s593 + $0x218] sm:$0xff]
      %v662 = vld [vmem:[%s593 + $0x220] sm:$0xff]
      %v663 = vld [vmem:[%s593 + $0x228] sm:$0xff]
      %v664 = vld [vmem:[%s593 + $0x230] sm:$0xff]
      %v665 = vld [vmem:[%s593 + $0x238] sm:$0xff]
      %v666 = vld [vmem:[%s593 + $0x240] sm:$0x7]
      %v667 = vld [vmem:[%s593 + $0x248] sm:$0x7]
      %v668 = vld [vmem:[%s593 + $0x250] sm:$0x7]
      %v669 = vld [vmem:[%s593 + $0x258] sm:$0x7]
      %v670 = vld [vmem:[%s593 + $0x260] sm:$0x7]
      %v671 = vld [vmem:[%s593 + $0x268] sm:$0x7]
      %v672 = vld [vmem:[%s593 + $0x270] sm:$0x7]
      %v673 = vld [vmem:[%s593 + $0x278] sm:$0x7]
      %v675 = vsel %vm260, %v666, 0
      %v678 = vsel %vm260, %v667, 0
      %v681 = vsel %vm260, %v668, 0
      %v684 = vsel %vm260, %v669, 0
      %v687 = vsel %vm260, %v670, 0
      %v690 = vsel %vm260, %v671, 0
      %v693 = vsel %vm260, %v672, 0
      %v696 = vsel %vm260, %v673, 0
      %698 = vmatprep.subr.mxu0 %v595
      %699 = vmatpush1.msra.mxu0 %v594
      %700 = vmatprep.subr.mxu0 %v603
      %701 = vmatpush1.msra.mxu0 %v602
      %702 = vmatprep.subr.mxu0 %v611
      %703 = vmatpush1.msra.mxu0 %v610
      %704 = vmatprep.subr.mxu0 %v619
      %705 = vmatpush1.msra.mxu0 %v618
      %706 = vmatprep.subr.mxu0 %v627
      %707 = vmatpush1.msra.mxu0 %v626
      %708 = vmatprep.subr.mxu0 %v635
      %709 = vmatpush1.msra.mxu0 %v634
      %710 = vmatprep.subr.mxu0 %v643
      %711 = vmatpush1.msra.mxu0 %v642
      %712 = vmatprep.subr.mxu0 %v651
      %713 = vmatpush1.msra.mxu0 %v650
      %714 = vmatprep.subr.mxu0 %v659
      %715 = vmatpush1.msra.mxu0 %v658
      %716 = vmatprep.subr.mxu0 %v678
      %717 = vmatpush1.msra.mxu0 %v675
      %718 = vmatprep.subr.mxu0 0.0
      %719 = vmatpush1.msra.mxu0 0.0
      %720 = vmatprep.subr.mxu0 0.0
      %721 = vmatpush1.msra.mxu0 0.0
      %722 = vmatprep.subr.mxu0 0.0
      %723 = vmatpush1.msra.mxu0 0.0
      %724 = vmatprep.subr.mxu0 0.0
      %725 = vmatpush1.msra.mxu0 0.0
      %726 = vmatprep.subr.mxu0 0.0
      %727 = vmatpush1.msra.mxu0 0.0
      %728 = vmatprep.subr.mxu0 0.0
      %729 = vmatpush1.msra.mxu0 0.0
      %730 = vmatprep.subr.mxu0 0.0
      %731 = vmatpush1.msra.mxu0 0.0
      %732 = vmatprep.subr.mxu0 0.0
      %733 = vmatpush1.msra.mxu0 0.0
      %734 = vmatprep.subr.mxu0 0.0
      %735 = vmatpush1.msra.mxu0 0.0
      %736 = vmatprep.subr.mxu0 0.0
      %737 = vmatpush1.msra.mxu0 0.0
      %738 = vmatprep.subr.mxu0 0.0
      %739 = vmatpush1.msra.mxu0 0.0
      %740 = vmatprep.subr.mxu0 0.0
      %741 = vmatpush1.msra.mxu0 0.0
      %742 = vmatprep.subr.mxu0 0.0
      %743 = vmatpush1.msra.mxu0 0.0
      %744 = vmatprep.subr.mxu0 0.0
      %745 = vmatpush1.msra.mxu0 0.0
      %746 = vmatprep.subr.mxu0 0.0
      %747 = vmatpush1.msra.mxu0 0.0
      %748 = vmatprep.subr.mxu0 0.0
      %749 = vmatpush1.msra.mxu0 0.0
      %750 = vmatprep.subr.mxu0 0.0
      %751 = vmatpush1.msra.mxu0 0.0
      %752 = vmatprep.subr.mxu0 0.0
      %753 = vmatpush1.msra.mxu0 0.0
      %754 = vmatprep.subr.mxu0 0.0
      %755 = vmatpush1.msra.mxu0 0.0
      %756 = vmatprep.subr.mxu0 0.0
      %757 = vmatpush1.msra.mxu0 0.0
      %758 = vmatprep.subr.mxu0 0.0
      %759 = vmatpush1.msra.mxu0 0.0
      %760 = vmatprep.subr.mxu0 0.0
      %761 = vmatpush1.msra.mxu0 0.0
      %762 = vmatprep.mubr.f32.mxu0 0.0
      %763 = vmatmul.mubr.f32.gmra.mrb[0].mxu0 %v255
      %v764 = vpop.f32.mrb[0].mxu0
      %v765 = vadd.f32 0.0, %v764
      %v766 = vpop.f32.mrb[0].mxu0
      %v767 = vadd.f32 0.0, %v766
      %768 = vmatprep.mubr.f32.mxu0 0.0
      %769 = vmatmul.mubr.f32.gmra.mrb[0].mxu0 %v258
      %v770 = vpop.f32.mrb[0].mxu0
      %v771 = vadd.f32 0.0, %v770
      %v772 = vpop.f32.mrb[0].mxu0
      %v773 = vadd.f32 0.0, %v772
      %774 = vdwg.mxu0
      %775 = vmatprep.subr.mxu0 %v597
      %776 = vmatpush1.msra.mxu0 %v596
      %777 = vmatprep.subr.mxu0 %v605
      %778 = vmatpush1.msra.mxu0 %v604
      %779 = vmatprep.subr.mxu0 %v613
      %780 = vmatpush1.msra.mxu0 %v612
      %781 = vmatprep.subr.mxu0 %v621
      %782 = vmatpush1.msra.mxu0 %v620
      %783 = vmatprep.subr.mxu0 %v629
      %784 = vmatpush1.msra.mxu0 %v628
      %785 = vmatprep.subr.mxu0 %v637
      %786 = vmatpush1.msra.mxu0 %v636
      %787 = vmatprep.subr.mxu0 %v645
      %788 = vmatpush1.msra.mxu0 %v644
      %789 = vmatprep.subr.mxu0 %v653
      %790 = vmatpush1.msra.mxu0 %v652
      %791 = vmatprep.subr.mxu0 %v661
      %792 = vmatpush1.msra.mxu0 %v660
      %793 = vmatprep.subr.mxu0 %v684
      %794 = vmatpush1.msra.mxu0 %v681
      %795 = vmatprep.subr.mxu0 0.0
      %796 = vmatpush1.msra.mxu0 0.0
      %797 = vmatprep.subr.mxu0 0.0
      %798 = vmatpush1.msra.mxu0 0.0
      %799 = vmatprep.subr.mxu0 0.0
      %800 = vmatpush1.msra.mxu0 0.0
      %801 = vmatprep.subr.mxu0 0.0
      %802 = vmatpush1.msra.mxu0 0.0
      %803 = vmatprep.subr.mxu0 0.0
      %804 = vmatpush1.msra.mxu0 0.0
      %805 = vmatprep.subr.mxu0 0.0
      %806 = vmatpush1.msra.mxu0 0.0
      %807 = vmatprep.subr.mxu0 0.0
      %808 = vmatpush1.msra.mxu0 0.0
      %809 = vmatprep.subr.mxu0 0.0
      %810 = vmatpush1.msra.mxu0 0.0
      %811 = vmatprep.subr.mxu0 0.0
      %812 = vmatpush1.msra.mxu0 0.0
      %813 = vmatprep.subr.mxu0 0.0
      %814 = vmatpush1.msra.mxu0 0.0
      %815 = vmatprep.subr.mxu0 0.0
      %816 = vmatpush1.msra.mxu0 0.0
      %817 = vmatprep.subr.mxu0 0.0
      %818 = vmatpush1.msra.mxu0 0.0
      %819 = vmatprep.subr.mxu0 0.0
      %820 = vmatpush1.msra.mxu0 0.0
      %821 = vmatprep.subr.mxu0 0.0
      %822 = vmatpush1.msra.mxu0 0.0
      %823 = vmatprep.subr.mxu0 0.0
      %824 = vmatpush1.msra.mxu0 0.0
      %825 = vmatprep.subr.mxu0 0.0
      %826 = vmatpush1.msra.mxu0 0.0
      %827 = vmatprep.subr.mxu0 0.0
      %828 = vmatpush1.msra.mxu0 0.0
      %829 = vmatprep.subr.mxu0 0.0
      %830 = vmatpush1.msra.mxu0 0.0
      %831 = vmatprep.subr.mxu0 0.0
      %832 = vmatpush1.msra.mxu0 0.0
      %833 = vmatprep.subr.mxu0 0.0
      %834 = vmatpush1.msra.mxu0 0.0
      %835 = vmatprep.subr.mxu0 0.0
      %836 = vmatpush1.msra.mxu0 0.0
      %837 = vmatprep.subr.mxu0 0.0
      %838 = vmatpush1.msra.mxu0 0.0
      %839 = vmatprep.mubr.f32.mxu0 0.0
      %840 = vmatmul.mubr.f32.gmra.mrb[0].mxu0 %v255
      %v841 = vpop.f32.mrb[0].mxu0
      %v842 = vadd.f32 0.0, %v841
      %v843 = vpop.f32.mrb[0].mxu0
      %v844 = vadd.f32 0.0, %v843
      %845 = vmatprep.mubr.f32.mxu0 0.0
      %846 = vmatmul.mubr.f32.gmra.mrb[0].mxu0 %v258
      %v847 = vpop.f32.mrb[0].mxu0
      %v848 = vadd.f32 0.0, %v847
      %v849 = vpop.f32.mrb[0].mxu0
      %v850 = vadd.f32 0.0, %v849
      %851 = vdwg.mxu0
      %852 = vmatprep.subr.mxu0 %v599
      %853 = vmatpush1.msra.mxu0 %v598
      %854 = vmatprep.subr.mxu0 %v607
      %855 = vmatpush1.msra.mxu0 %v606
      %856 = vmatprep.subr.mxu0 %v615
      %857 = vmatpush1.msra.mxu0 %v614
      %858 = vmatprep.subr.mxu0 %v623
      %859 = vmatpush1.msra.mxu0 %v622
      %860 = vmatprep.subr.mxu0 %v631
      %861 = vmatpush1.msra.mxu0 %v630
      %862 = vmatprep.subr.mxu0 %v639
      %863 = vmatpush1.msra.mxu0 %v638
      %864 = vmatprep.subr.mxu0 %v647
      %865 = vmatpush1.msra.mxu0 %v646
      %866 = vmatprep.subr.mxu0 %v655
      %867 = vmatpush1.msra.mxu0 %v654
      %868 = vmatprep.subr.mxu0 %v663
      %869 = vmatpush1.msra.mxu0 %v662
      %870 = vmatprep.subr.mxu0 %v690
      %871 = vmatpush1.msra.mxu0 %v687
      %872 = vmatprep.subr.mxu0 0.0
      %873 = vmatpush1.msra.mxu0 0.0
      %874 = vmatprep.subr.mxu0 0.0
      %875 = vmatpush1.msra.mxu0 0.0
      %876 = vmatprep.subr.mxu0 0.0
      %877 = vmatpush1.msra.mxu0 0.0
      %878 = vmatprep.subr.mxu0 0.0
      %879 = vmatpush1.msra.mxu0 0.0
      %880 = vmatprep.subr.mxu0 0.0
      %881 = vmatpush1.msra.mxu0 0.0
      %882 = vmatprep.subr.mxu0 0.0
      %883 = vmatpush1.msra.mxu0 0.0
      %884 = vmatprep.subr.mxu0 0.0
      %885 = vmatpush1.msra.mxu0 0.0
      %886 = vmatprep.subr.mxu0 0.0
      %887 = vmatpush1.msra.mxu0 0.0
      %888 = vmatprep.subr.mxu0 0.0
      %889 = vmatpush1.msra.mxu0 0.0
      %890 = vmatprep.subr.mxu0 0.0
      %891 = vmatpush1.msra.mxu0 0.0
      %892 = vmatprep.subr.mxu0 0.0
      %893 = vmatpush1.msra.mxu0 0.0
      %894 = vmatprep.subr.mxu0 0.0
      %895 = vmatpush1.msra.mxu0 0.0
      %896 = vmatprep.subr.mxu0 0.0
      %897 = vmatpush1.msra.mxu0 0.0
      %898 = vmatprep.subr.mxu0 0.0
      %899 = vmatpush1.msra.mxu0 0.0
      %900 = vmatprep.subr.mxu0 0.0
      %901 = vmatpush1.msra.mxu0 0.0
      %902 = vmatprep.subr.mxu0 0.0
      %903 = vmatpush1.msra.mxu0 0.0
      %904 = vmatprep.subr.mxu0 0.0
      %905 = vmatpush1.msra.mxu0 0.0
      %906 = vmatprep.subr.mxu0 0.0
      %907 = vmatpush1.msra.mxu0 0.0
      %908 = vmatprep.subr.mxu0 0.0
      %909 = vmatpush1.msra.mxu0 0.0
      %910 = vmatprep.subr.mxu0 0.0
      %911 = vmatpush1.msra.mxu0 0.0
      %912 = vmatprep.subr.mxu0 0.0
      %913 = vmatpush1.msra.mxu0 0.0
      %914 = vmatprep.subr.mxu0 0.0
      %915 = vmatpush1.msra.mxu0 0.0
      %916 = vmatprep.mubr.f32.mxu0 0.0
      %917 = vmatmul.mubr.f32.gmra.mrb[0].mxu0 %v255
      %v918 = vpop.f32.mrb[0].mxu0
      %v919 = vadd.f32 0.0, %v918
      %v920 = vpop.f32.mrb[0].mxu0
      %v921 = vadd.f32 0.0, %v920
      %922 = vmatprep.mubr.f32.mxu0 0.0
      %923 = vmatmul.mubr.f32.gmra.mrb[0].mxu0 %v258
      %v924 = vpop.f32.mrb[0].mxu0
      %v925 = vadd.f32 0.0, %v924
      %v926 = vpop.f32.mrb[0].mxu0
      %v927 = vadd.f32 0.0, %v926
      %928 = vdwg.mxu0
      %929 = vmatprep.subr.mxu0 %v601
      %930 = vmatpush1.msra.mxu0 %v600
      %931 = vmatprep.subr.mxu0 %v609
      %932 = vmatpush1.msra.mxu0 %v608
      %933 = vmatprep.subr.mxu0 %v617
      %934 = vmatpush1.msra.mxu0 %v616
      %935 = vmatprep.subr.mxu0 %v625
      %936 = vmatpush1.msra.mxu0 %v624
      %937 = vmatprep.subr.mxu0 %v633
      %938 = vmatpush1.msra.mxu0 %v632
      %939 = vmatprep.subr.mxu0 %v641
      %940 = vmatpush1.msra.mxu0 %v640
      %941 = vmatprep.subr.mxu0 %v649
      %942 = vmatpush1.msra.mxu0 %v648
      %943 = vmatprep.subr.mxu0 %v657
      %944 = vmatpush1.msra.mxu0 %v656
      %945 = vmatprep.subr.mxu0 %v665
      %946 = vmatpush1.msra.mxu0 %v664
      %947 = vmatprep.subr.mxu0 %v696
      %948 = vmatpush1.msra.mxu0 %v693
      %949 = vmatprep.subr.mxu0 0.0
      %950 = vmatpush1.msra.mxu0 0.0
      %951 = vmatprep.subr.mxu0 0.0
      %952 = vmatpush1.msra.mxu0 0.0
      %953 = vmatprep.subr.mxu0 0.0
      %954 = vmatpush1.msra.mxu0 0.0
      %955 = vmatprep.subr.mxu0 0.0
      %956 = vmatpush1.msra.mxu0 0.0
      %957 = vmatprep.subr.mxu0 0.0
      %958 = vmatpush1.msra.mxu0 0.0
      %959 = vmatprep.subr.mxu0 0.0
      %960 = vmatpush1.msra.mxu0 0.0
      %961 = vmatprep.subr.mxu0 0.0
      %962 = vmatpush1.msra.mxu0 0.0
      %963 = vmatprep.subr.mxu0 0.0
      %964 = vmatpush1.msra.mxu0 0.0
      %965 = vmatprep.subr.mxu0 0.0
      %966 = vmatpush1.msra.mxu0 0.0
      %967 = vmatprep.subr.mxu0 0.0
      %968 = vmatpush1.msra.mxu0 0.0
      %969 = vmatprep.subr.mxu0 0.0
      %970 = vmatpush1.msra.mxu0 0.0
      %971 = vmatprep.subr.mxu0 0.0
      %972 = vmatpush1.msra.mxu0 0.0
      %973 = vmatprep.subr.mxu0 0.0
      %974 = vmatpush1.msra.mxu0 0.0
      %975 = vmatprep.subr.mxu0 0.0
      %976 = vmatpush1.msra.mxu0 0.0
      %977 = vmatprep.subr.mxu0 0.0
      %978 = vmatpush1.msra.mxu0 0.0
      %979 = vmatprep.subr.mxu0 0.0
      %980 = vmatpush1.msra.mxu0 0.0
      %981 = vmatprep.subr.mxu0 0.0
      %982 = vmatpush1.msra.mxu0 0.0
      %983 = vmatprep.subr.mxu0 0.0
      %984 = vmatpush1.msra.mxu0 0.0
      %985 = vmatprep.subr.mxu0 0.0
      %986 = vmatpush1.msra.mxu0 0.0
      %987 = vmatprep.subr.mxu0 0.0
      %988 = vmatpush1.msra.mxu0 0.0
      %989 = vmatprep.subr.mxu0 0.0
      %990 = vmatpush1.msra.mxu0 0.0
      %991 = vmatprep.subr.mxu0 0.0
      %992 = vmatpush1.msra.mxu0 0.0
      %993 = vmatprep.mubr.f32.mxu0 0.0
      %994 = vmatmul.mubr.f32.gmra.mrb[0].mxu0 %v255
      %v995 = vpop.f32.mrb[0].mxu0
      %v996 = vadd.f32 0.0, %v995
      %v997 = vpop.f32.mrb[0].mxu0
      %v998 = vadd.f32 0.0, %v997
      %999 = vmatprep.mubr.f32.mxu0 0.0
      %1000 = vmatmul.mubr.f32.gmra.mrb[0].mxu0 %v258
      %v1001 = vpop.f32.mrb[0].mxu0
      %v1002 = vadd.f32 0.0, %v1001
      %v1003 = vpop.f32.mrb[0].mxu0
      %v1004 = vadd.f32 0.0, %v1003
      %1005 = vdwg.mxu0
      %v1006 = vmax.f32 %v352, %v765
      %v1007 = vmax.f32 %v354, %v767
      %v1008 = vmax.f32 %v429, %v842
      %v1009 = vmax.f32 %v431, %v844
      %v1010 = vmax.f32 %v506, %v919
      %v1011 = vmax.f32 %v508, %v921
      %v1012 = vmax.f32 %v583, %v996
      %v1013 = vmax.f32 %v585, %v998
      %v1014 = vmax.f32 %v358, %v771
      %v1015 = vmax.f32 %v360, %v773
      %v1016 = vmax.f32 %v435, %v848
      %v1017 = vmax.f32 %v437, %v850
      %v1018 = vmax.f32 %v512, %v925
      %v1019 = vmax.f32 %v514, %v927
      %v1020 = vmax.f32 %v589, %v1002
      %v1021 = vmax.f32 %v591, %v1004
      %s1022 = scalar_lea.vmem %s165, 1280
      %v1023 = vld [vmem:[%s1022] sm:$0xff]
      %v1024 = vld [vmem:[%s1022 + $0x8] sm:$0xff]
      %v1025 = vld [vmem:[%s1022 + $0x10] sm:$0xff]
      %v1026 = vld [vmem:[%s1022 + $0x18] sm:$0xff]
      %v1027 = vld [vmem:[%s1022 + $0x20] sm:$0xff]
      %v1028 = vld [vmem:[%s1022 + $0x28] sm:$0xff]
      %v1029 = vld [vmem:[%s1022 + $0x30] sm:$0xff]
      %v1030 = vld [vmem:[%s1022 + $0x38] sm:$0xff]
      %v1031 = vld [vmem:[%s1022 + $0x40] sm:$0xff]
      %v1032 = vld [vmem:[%s1022 + $0x48] sm:$0xff]
      %v1033 = vld [vmem:[%s1022 + $0x50] sm:$0xff]
      %v1034 = vld [vmem:[%s1022 + $0x58] sm:$0xff]
      %v1035 = vld [vmem:[%s1022 + $0x60] sm:$0xff]
      %v1036 = vld [vmem:[%s1022 + $0x68] sm:$0xff]
      %v1037 = vld [vmem:[%s1022 + $0x70] sm:$0xff]
      %v1038 = vld [vmem:[%s1022 + $0x78] sm:$0xff]
      %v1039 = vld [vmem:[%s1022 + $0x80] sm:$0xff]
      %v1040 = vld [vmem:[%s1022 + $0x88] sm:$0xff]
      %v1041 = vld [vmem:[%s1022 + $0x90] sm:$0xff]
      %v1042 = vld [vmem:[%s1022 + $0x98] sm:$0xff]
      %v1043 = vld [vmem:[%s1022 + $0xa0] sm:$0xff]
      %v1044 = vld [vmem:[%s1022 + $0xa8] sm:$0xff]
      %v1045 = vld [vmem:[%s1022 + $0xb0] sm:$0xff]
      %v1046 = vld [vmem:[%s1022 + $0xb8] sm:$0xff]
      %v1047 = vld [vmem:[%s1022 + $0xc0] sm:$0xff]
      %v1048 = vld [vmem:[%s1022 + $0xc8] sm:$0xff]
      %v1049 = vld [vmem:[%s1022 + $0xd0] sm:$0xff]
      %v1050 = vld [vmem:[%s1022 + $0xd8] sm:$0xff]
      %v1051 = vld [vmem:[%s1022 + $0xe0] sm:$0xff]
      %v1052 = vld [vmem:[%s1022 + $0xe8] sm:$0xff]
      %v1053 = vld [vmem:[%s1022 + $0xf0] sm:$0xff]
      %v1054 = vld [vmem:[%s1022 + $0xf8] sm:$0xff]
      %v1055 = vld [vmem:[%s1022 + $0x100] sm:$0xff]
      %v1056 = vld [vmem:[%s1022 + $0x108] sm:$0xff]
      %v1057 = vld [vmem:[%s1022 + $0x110] sm:$0xff]
      %v1058 = vld [vmem:[%s1022 + $0x118] sm:$0xff]
      %v1059 = vld [vmem:[%s1022 + $0x120] sm:$0xff]
      %v1060 = vld [vmem:[%s1022 + $0x128] sm:$0xff]
      %v1061 = vld [vmem:[%s1022 + $0x130] sm:$0xff]
      %v1062 = vld [vmem:[%s1022 + $0x138] sm:$0xff]
      %v1063 = vld [vmem:[%s1022 + $0x140] sm:$0xff]
      %v1064 = vld [vmem:[%s1022 + $0x148] sm:$0xff]
      %v1065 = vld [vmem:[%s1022 + $0x150] sm:$0xff]
      %v1066 = vld [vmem:[%s1022 + $0x158] sm:$0xff]
      %v1067 = vld [vmem:[%s1022 + $0x160] sm:$0xff]
      %v1068 = vld [vmem:[%s1022 + $0x168] sm:$0xff]
      %v1069 = vld [vmem:[%s1022 + $0x170] sm:$0xff]
      %v1070 = vld [vmem:[%s1022 + $0x178] sm:$0xff]
      %v1071 = vld [vmem:[%s1022 + $0x180] sm:$0xff]
      %v1072 = vld [vmem:[%s1022 + $0x188] sm:$0xff]
      %v1073 = vld [vmem:[%s1022 + $0x190] sm:$0xff]
      %v1074 = vld [vmem:[%s1022 + $0x198] sm:$0xff]
      %v1075 = vld [vmem:[%s1022 + $0x1a0] sm:$0xff]
      %v1076 = vld [vmem:[%s1022 + $0x1a8] sm:$0xff]
      %v1077 = vld [vmem:[%s1022 + $0x1b0] sm:$0xff]
      %v1078 = vld [vmem:[%s1022 + $0x1b8] sm:$0xff]
      %v1079 = vld [vmem:[%s1022 + $0x1c0] sm:$0xff]
      %v1080 = vld [vmem:[%s1022 + $0x1c8] sm:$0xff]
      %v1081 = vld [vmem:[%s1022 + $0x1d0] sm:$0xff]
      %v1082 = vld [vmem:[%s1022 + $0x1d8] sm:$0xff]
      %v1083 = vld [vmem:[%s1022 + $0x1e0] sm:$0xff]
      %v1084 = vld [vmem:[%s1022 + $0x1e8] sm:$0xff]
      %v1085 = vld [vmem:[%s1022 + $0x1f0] sm:$0xff]
      %v1086 = vld [vmem:[%s1022 + $0x1f8] sm:$0xff]
      %v1087 = vld [vmem:[%s1022 + $0x200] sm:$0xff]
      %v1088 = vld [vmem:[%s1022 + $0x208] sm:$0xff]
      %v1089 = vld [vmem:[%s1022 + $0x210] sm:$0xff]
      %v1090 = vld [vmem:[%s1022 + $0x218] sm:$0xff]
      %v1091 = vld [vmem:[%s1022 + $0x220] sm:$0xff]
      %v1092 = vld [vmem:[%s1022 + $0x228] sm:$0xff]
      %v1093 = vld [vmem:[%s1022 + $0x230] sm:$0xff]
      %v1094 = vld [vmem:[%s1022 + $0x238] sm:$0xff]
      %v1095 = vld [vmem:[%s1022 + $0x240] sm:$0x7]
      %v1096 = vld [vmem:[%s1022 + $0x248] sm:$0x7]
      %v1097 = vld [vmem:[%s1022 + $0x250] sm:$0x7]
      %v1098 = vld [vmem:[%s1022 + $0x258] sm:$0x7]
      %v1099 = vld [vmem:[%s1022 + $0x260] sm:$0x7]
      %v1100 = vld [vmem:[%s1022 + $0x268] sm:$0x7]
      %v1101 = vld [vmem:[%s1022 + $0x270] sm:$0x7]
      %v1102 = vld [vmem:[%s1022 + $0x278] sm:$0x7]
      %v1104 = vsel %vm260, %v1095, 0
      %v1107 = vsel %vm260, %v1096, 0
      %v1110 = vsel %vm260, %v1097, 0
      %v1113 = vsel %vm260, %v1098, 0
      %v1116 = vsel %vm260, %v1099, 0
      %v1119 = vsel %vm260, %v1100, 0
      %v1122 = vsel %vm260, %v1101, 0
      %v1125 = vsel %vm260, %v1102, 0
      %1127 = vmatprep.subr.mxu0 %v1024
      %1128 = vmatpush1.msra.mxu0 %v1023
      %1129 = vmatprep.subr.mxu0 %v1032
      %1130 = vmatpush1.msra.mxu0 %v1031
      %1131 = vmatprep.subr.mxu0 %v1040
      %1132 = vmatpush1.msra.mxu0 %v1039
      %1133 = vmatprep.subr.mxu0 %v1048
      %1134 = vmatpush1.msra.mxu0 %v1047
      %1135 = vmatprep.subr.mxu0 %v1056
      %1136 = vmatpush1.msra.mxu0 %v1055
      %1137 = vmatprep.subr.mxu0 %v1064
      %1138 = vmatpush1.msra.mxu0 %v1063
      %1139 = vmatprep.subr.mxu0 %v1072
      %1140 = vmatpush1.msra.mxu0 %v1071
      %1141 = vmatprep.subr.mxu0 %v1080
      %1142 = vmatpush1.msra.mxu0 %v1079
      %1143 = vmatprep.subr.mxu0 %v1088
      %1144 = vmatpush1.msra.mxu0 %v1087
      %1145 = vmatprep.subr.mxu0 %v1107
      %1146 = vmatpush1.msra.mxu0 %v1104
      %1147 = vmatprep.subr.mxu0 0.0
      %1148 = vmatpush1.msra.mxu0 0.0
      %1149 = vmatprep.subr.mxu0 0.0
      %1150 = vmatpush1.msra.mxu0 0.0
      %1151 = vmatprep.subr.mxu0 0.0
      %1152 = vmatpush1.msra.mxu0 0.0
      %1153 = vmatprep.subr.mxu0 0.0
      %1154 = vmatpush1.msra.mxu0 0.0
      %1155 = vmatprep.subr.mxu0 0.0
      %1156 = vmatpush1.msra.mxu0 0.0
      %1157 = vmatprep.subr.mxu0 0.0
      %1158 = vmatpush1.msra.mxu0 0.0
      %1159 = vmatprep.subr.mxu0 0.0
      %1160 = vmatpush1.msra.mxu0 0.0
      %1161 = vmatprep.subr.mxu0 0.0
      %1162 = vmatpush1.msra.mxu0 0.0
      %1163 = vmatprep.subr.mxu0 0.0
      %1164 = vmatpush1.msra.mxu0 0.0
      %1165 = vmatprep.subr.mxu0 0.0
      %1166 = vmatpush1.msra.mxu0 0.0
      %1167 = vmatprep.subr.mxu0 0.0
      %1168 = vmatpush1.msra.mxu0 0.0
      %1169 = vmatprep.subr.mxu0 0.0
      %1170 = vmatpush1.msra.mxu0 0.0
      %1171 = vmatprep.subr.mxu0 0.0
      %1172 = vmatpush1.msra.mxu0 0.0
      %1173 = vmatprep.subr.mxu0 0.0
      %1174 = vmatpush1.msra.mxu0 0.0
      %1175 = vmatprep.subr.mxu0 0.0
      %1176 = vmatpush1.msra.mxu0 0.0
      %1177 = vmatprep.subr.mxu0 0.0
      %1178 = vmatpush1.msra.mxu0 0.0
      %1179 = vmatprep.subr.mxu0 0.0
      %1180 = vmatpush1.msra.mxu0 0.0
      %1181 = vmatprep.subr.mxu0 0.0
      %1182 = vmatpush1.msra.mxu0 0.0
      %1183 = vmatprep.subr.mxu0 0.0
      %1184 = vmatpush1.msra.mxu0 0.0
      %1185 = vmatprep.subr.mxu0 0.0
      %1186 = vmatpush1.msra.mxu0 0.0
      %1187 = vmatprep.subr.mxu0 0.0
      %1188 = vmatpush1.msra.mxu0 0.0
      %1189 = vmatprep.subr.mxu0 0.0
      %1190 = vmatpush1.msra.mxu0 0.0
      %1191 = vmatprep.mubr.f32.mxu0 0.0
      %1192 = vmatmul.mubr.f32.gmra.mrb[0].mxu0 %v255
      %v1193 = vpop.f32.mrb[0].mxu0
      %v1194 = vadd.f32 0.0, %v1193
      %v1195 = vpop.f32.mrb[0].mxu0
      %v1196 = vadd.f32 0.0, %v1195
      %1197 = vmatprep.mubr.f32.mxu0 0.0
      %1198 = vmatmul.mubr.f32.gmra.mrb[0].mxu0 %v258
      %v1199 = vpop.f32.mrb[0].mxu0
      %v1200 = vadd.f32 0.0, %v1199
      %v1201 = vpop.f32.mrb[0].mxu0
      %v1202 = vadd.f32 0.0, %v1201
      %1203 = vdwg.mxu0
      %1204 = vmatprep.subr.mxu0 %v1026
      %1205 = vmatpush1.msra.mxu0 %v1025
      %1206 = vmatprep.subr.mxu0 %v1034
      %1207 = vmatpush1.msra.mxu0 %v1033
      %1208 = vmatprep.subr.mxu0 %v1042
      %1209 = vmatpush1.msra.mxu0 %v1041
      %1210 = vmatprep.subr.mxu0 %v1050
      %1211 = vmatpush1.msra.mxu0 %v1049
      %1212 = vmatprep.subr.mxu0 %v1058
      %1213 = vmatpush1.msra.mxu0 %v1057
      %1214 = vmatprep.subr.mxu0 %v1066
      %1215 = vmatpush1.msra.mxu0 %v1065
      %1216 = vmatprep.subr.mxu0 %v1074
      %1217 = vmatpush1.msra.mxu0 %v1073
      %1218 = vmatprep.subr.mxu0 %v1082
      %1219 = vmatpush1.msra.mxu0 %v1081
      %1220 = vmatprep.subr.mxu0 %v1090
      %1221 = vmatpush1.msra.mxu0 %v1089
      %1222 = vmatprep.subr.mxu0 %v1113
      %1223 = vmatpush1.msra.mxu0 %v1110
      %1224 = vmatprep.subr.mxu0 0.0
      %1225 = vmatpush1.msra.mxu0 0.0
      %1226 = vmatprep.subr.mxu0 0.0
      %1227 = vmatpush1.msra.mxu0 0.0
      %1228 = vmatprep.subr.mxu0 0.0
      %1229 = vmatpush1.msra.mxu0 0.0
      %1230 = vmatprep.subr.mxu0 0.0
      %1231 = vmatpush1.msra.mxu0 0.0
      %1232 = vmatprep.subr.mxu0 0.0
      %1233 = vmatpush1.msra.mxu0 0.0
      %1234 = vmatprep.subr.mxu0 0.0
      %1235 = vmatpush1.msra.mxu0 0.0
      %1236 = vmatprep.subr.mxu0 0.0
      %1237 = vmatpush1.msra.mxu0 0.0
      %1238 = vmatprep.subr.mxu0 0.0
      %1239 = vmatpush1.msra.mxu0 0.0
      %1240 = vmatprep.subr.mxu0 0.0
      %1241 = vmatpush1.msra.mxu0 0.0
      %1242 = vmatprep.subr.mxu0 0.0
      %1243 = vmatpush1.msra.mxu0 0.0
      %1244 = vmatprep.subr.mxu0 0.0
      %1245 = vmatpush1.msra.mxu0 0.0
      %1246 = vmatprep.subr.mxu0 0.0
      %1247 = vmatpush1.msra.mxu0 0.0
      %1248 = vmatprep.subr.mxu0 0.0
      %1249 = vmatpush1.msra.mxu0 0.0
      %1250 = vmatprep.subr.mxu0 0.0
      %1251 = vmatpush1.msra.mxu0 0.0
      %1252 = vmatprep.subr.mxu0 0.0
      %1253 = vmatpush1.msra.mxu0 0.0
      %1254 = vmatprep.subr.mxu0 0.0
      %1255 = vmatpush1.msra.mxu0 0.0
      %1256 = vmatprep.subr.mxu0 0.0
      %1257 = vmatpush1.msra.mxu0 0.0
      %1258 = vmatprep.subr.mxu0 0.0
      %1259 = vmatpush1.msra.mxu0 0.0
      %1260 = vmatprep.subr.mxu0 0.0
      %1261 = vmatpush1.msra.mxu0 0.0
      %1262 = vmatprep.subr.mxu0 0.0
      %1263 = vmatpush1.msra.mxu0 0.0
      %1264 = vmatprep.subr.mxu0 0.0
      %1265 = vmatpush1.msra.mxu0 0.0
      %1266 = vmatprep.subr.mxu0 0.0
      %1267 = vmatpush1.msra.mxu0 0.0
      %1268 = vmatprep.mubr.f32.mxu0 0.0
      %1269 = vmatmul.mubr.f32.gmra.mrb[0].mxu0 %v255
      %v1270 = vpop.f32.mrb[0].mxu0
      %v1271 = vadd.f32 0.0, %v1270
      %v1272 = vpop.f32.mrb[0].mxu0
      %v1273 = vadd.f32 0.0, %v1272
      %1274 = vmatprep.mubr.f32.mxu0 0.0
      %1275 = vmatmul.mubr.f32.gmra.mrb[0].mxu0 %v258
      %v1276 = vpop.f32.mrb[0].mxu0
      %v1277 = vadd.f32 0.0, %v1276
      %v1278 = vpop.f32.mrb[0].mxu0
      %v1279 = vadd.f32 0.0, %v1278
      %1280 = vdwg.mxu0
      %1281 = vmatprep.subr.mxu0 %v1028
      %1282 = vmatpush1.msra.mxu0 %v1027
      %1283 = vmatprep.subr.mxu0 %v1036
      %1284 = vmatpush1.msra.mxu0 %v1035
      %1285 = vmatprep.subr.mxu0 %v1044
      %1286 = vmatpush1.msra.mxu0 %v1043
      %1287 = vmatprep.subr.mxu0 %v1052
      %1288 = vmatpush1.msra.mxu0 %v1051
      %1289 = vmatprep.subr.mxu0 %v1060
      %1290 = vmatpush1.msra.mxu0 %v1059
      %1291 = vmatprep.subr.mxu0 %v1068
      %1292 = vmatpush1.msra.mxu0 %v1067
      %1293 = vmatprep.subr.mxu0 %v1076
      %1294 = vmatpush1.msra.mxu0 %v1075
      %1295 = vmatprep.subr.mxu0 %v1084
      %1296 = vmatpush1.msra.mxu0 %v1083
      %1297 = vmatprep.subr.mxu0 %v1092
      %1298 = vmatpush1.msra.mxu0 %v1091
      %1299 = vmatprep.subr.mxu0 %v1119
      %1300 = vmatpush1.msra.mxu0 %v1116
      %1301 = vmatprep.subr.mxu0 0.0
      %1302 = vmatpush1.msra.mxu0 0.0
      %1303 = vmatprep.subr.mxu0 0.0
      %1304 = vmatpush1.msra.mxu0 0.0
      %1305 = vmatprep.subr.mxu0 0.0
      %1306 = vmatpush1.msra.mxu0 0.0
      %1307 = vmatprep.subr.mxu0 0.0
      %1308 = vmatpush1.msra.mxu0 0.0
      %1309 = vmatprep.subr.mxu0 0.0
      %1310 = vmatpush1.msra.mxu0 0.0
      %1311 = vmatprep.subr.mxu0 0.0
      %1312 = vmatpush1.msra.mxu0 0.0
      %1313 = vmatprep.subr.mxu0 0.0
      %1314 = vmatpush1.msra.mxu0 0.0
      %1315 = vmatprep.subr.mxu0 0.0
      %1316 = vmatpush1.msra.mxu0 0.0
      %1317 = vmatprep.subr.mxu0 0.0
      %1318 = vmatpush1.msra.mxu0 0.0
      %1319 = vmatprep.subr.mxu0 0.0
      %1320 = vmatpush1.msra.mxu0 0.0
      %1321 = vmatprep.subr.mxu0 0.0
      %1322 = vmatpush1.msra.mxu0 0.0
      %1323 = vmatprep.subr.mxu0 0.0
      %1324 = vmatpush1.msra.mxu0 0.0
      %1325 = vmatprep.subr.mxu0 0.0
      %1326 = vmatpush1.msra.mxu0 0.0
      %1327 = vmatprep.subr.mxu0 0.0
      %1328 = vmatpush1.msra.mxu0 0.0
      %1329 = vmatprep.subr.mxu0 0.0
      %1330 = vmatpush1.msra.mxu0 0.0
      %1331 = vmatprep.subr.mxu0 0.0
      %1332 = vmatpush1.msra.mxu0 0.0
      %1333 = vmatprep.subr.mxu0 0.0
      %1334 = vmatpush1.msra.mxu0 0.0
      %1335 = vmatprep.subr.mxu0 0.0
      %1336 = vmatpush1.msra.mxu0 0.0
      %1337 = vmatprep.subr.mxu0 0.0
      %1338 = vmatpush1.msra.mxu0 0.0
      %1339 = vmatprep.subr.mxu0 0.0
      %1340 = vmatpush1.msra.mxu0 0.0
      %1341 = vmatprep.subr.mxu0 0.0
      %1342 = vmatpush1.msra.mxu0 0.0
      %1343 = vmatprep.subr.mxu0 0.0
      %1344 = vmatpush1.msra.mxu0 0.0
      %1345 = vmatprep.mubr.f32.mxu0 0.0
      %1346 = vmatmul.mubr.f32.gmra.mrb[0].mxu0 %v255
      %v1347 = vpop.f32.mrb[0].mxu0
      %v1348 = vadd.f32 0.0, %v1347
      %v1349 = vpop.f32.mrb[0].mxu0
      %v1350 = vadd.f32 0.0, %v1349
      %1351 = vmatprep.mubr.f32.mxu0 0.0
      %1352 = vmatmul.mubr.f32.gmra.mrb[0].mxu0 %v258
      %v1353 = vpop.f32.mrb[0].mxu0
      %v1354 = vadd.f32 0.0, %v1353
      %v1355 = vpop.f32.mrb[0].mxu0
      %v1356 = vadd.f32 0.0, %v1355
      %1357 = vdwg.mxu0
      %1358 = vmatprep.subr.mxu0 %v1030
      %1359 = vmatpush1.msra.mxu0 %v1029
      %1360 = vmatprep.subr.mxu0 %v1038
      %1361 = vmatpush1.msra.mxu0 %v1037
      %1362 = vmatprep.subr.mxu0 %v1046
      %1363 = vmatpush1.msra.mxu0 %v1045
      %1364 = vmatprep.subr.mxu0 %v1054
      %1365 = vmatpush1.msra.mxu0 %v1053
      %1366 = vmatprep.subr.mxu0 %v1062
      %1367 = vmatpush1.msra.mxu0 %v1061
      %1368 = vmatprep.subr.mxu0 %v1070
      %1369 = vmatpush1.msra.mxu0 %v1069
      %1370 = vmatprep.subr.mxu0 %v1078
      %1371 = vmatpush1.msra.mxu0 %v1077
      %1372 = vmatprep.subr.mxu0 %v1086
      %1373 = vmatpush1.msra.mxu0 %v1085
      %1374 = vmatprep.subr.mxu0 %v1094
      %1375 = vmatpush1.msra.mxu0 %v1093
      %1376 = vmatprep.subr.mxu0 %v1125
      %1377 = vmatpush1.msra.mxu0 %v1122
      %1378 = vmatprep.subr.mxu0 0.0
      %1379 = vmatpush1.msra.mxu0 0.0
      %1380 = vmatprep.subr.mxu0 0.0
      %1381 = vmatpush1.msra.mxu0 0.0
      %1382 = vmatprep.subr.mxu0 0.0
      %1383 = vmatpush1.msra.mxu0 0.0
      %1384 = vmatprep.subr.mxu0 0.0
      %1385 = vmatpush1.msra.mxu0 0.0
      %1386 = vmatprep.subr.mxu0 0.0
      %1387 = vmatpush1.msra.mxu0 0.0
      %1388 = vmatprep.subr.mxu0 0.0
      %1389 = vmatpush1.msra.mxu0 0.0
      %1390 = vmatprep.subr.mxu0 0.0
      %1391 = vmatpush1.msra.mxu0 0.0
      %1392 = vmatprep.subr.mxu0 0.0
      %1393 = vmatpush1.msra.mxu0 0.0
      %1394 = vmatprep.subr.mxu0 0.0
      %1395 = vmatpush1.msra.mxu0 0.0
      %1396 = vmatprep.subr.mxu0 0.0
      %1397 = vmatpush1.msra.mxu0 0.0
      %1398 = vmatprep.subr.mxu0 0.0
      %1399 = vmatpush1.msra.mxu0 0.0
      %1400 = vmatprep.subr.mxu0 0.0
      %1401 = vmatpush1.msra.mxu0 0.0
      %1402 = vmatprep.subr.mxu0 0.0
      %1403 = vmatpush1.msra.mxu0 0.0
      %1404 = vmatprep.subr.mxu0 0.0
      %1405 = vmatpush1.msra.mxu0 0.0
      %1406 = vmatprep.subr.mxu0 0.0
      %1407 = vmatpush1.msra.mxu0 0.0
      %1408 = vmatprep.subr.mxu0 0.0
      %1409 = vmatpush1.msra.mxu0 0.0
      %1410 = vmatprep.subr.mxu0 0.0
      %1411 = vmatpush1.msra.mxu0 0.0
      %1412 = vmatprep.subr.mxu0 0.0
      %1413 = vmatpush1.msra.mxu0 0.0
      %1414 = vmatprep.subr.mxu0 0.0
      %1415 = vmatpush1.msra.mxu0 0.0
      %1416 = vmatprep.subr.mxu0 0.0
      %1417 = vmatpush1.msra.mxu0 0.0
      %1418 = vmatprep.subr.mxu0 0.0
      %1419 = vmatpush1.msra.mxu0 0.0
      %1420 = vmatprep.subr.mxu0 0.0
      %1421 = vmatpush1.msra.mxu0 0.0
      %1422 = vmatprep.mubr.f32.mxu0 0.0
      %1423 = vmatmul.mubr.f32.gmra.mrb[0].mxu0 %v255
      %v1424 = vpop.f32.mrb[0].mxu0
      %v1425 = vadd.f32 0.0, %v1424
      %v1426 = vpop.f32.mrb[0].mxu0
      %v1427 = vadd.f32 0.0, %v1426
      %1428 = vmatprep.mubr.f32.mxu0 0.0
      %1429 = vmatmul.mubr.f32.gmra.mrb[0].mxu0 %v258
      %v1430 = vpop.f32.mrb[0].mxu0
      %v1431 = vadd.f32 0.0, %v1430
      %v1432 = vpop.f32.mrb[0].mxu0
      %v1433 = vadd.f32 0.0, %v1432
      %1434 = vdwg.mxu0
      %v1435 = vmax.f32 %v1006, %v1194
      %v1436 = vmax.f32 %v1007, %v1196
      %v1437 = vmax.f32 %v1008, %v1271
      %v1438 = vmax.f32 %v1009, %v1273
      %v1439 = vmax.f32 %v1010, %v1348
      %v1440 = vmax.f32 %v1011, %v1350
      %v1441 = vmax.f32 %v1012, %v1425
      %v1442 = vmax.f32 %v1013, %v1427
      %v1443 = vmax.f32 %v1014, %v1200
      %v1444 = vmax.f32 %v1015, %v1202
      %v1445 = vmax.f32 %v1016, %v1277
      %v1446 = vmax.f32 %v1017, %v1279
      %v1447 = vmax.f32 %v1018, %v1354
      %v1448 = vmax.f32 %v1019, %v1356
      %v1449 = vmax.f32 %v1020, %v1431
      %v1450 = vmax.f32 %v1021, %v1433
      %s1451 = scalar_lea.vmem %s165, 1920
      %v1452 = vld [vmem:[%s1451] sm:$0xff]
      %v1453 = vld [vmem:[%s1451 + $0x8] sm:$0xff]
      %v1454 = vld [vmem:[%s1451 + $0x10] sm:$0xff]
      %v1455 = vld [vmem:[%s1451 + $0x18] sm:$0xff]
      %v1456 = vld [vmem:[%s1451 + $0x20] sm:$0xff]
      %v1457 = vld [vmem:[%s1451 + $0x28] sm:$0xff]
      %v1458 = vld [vmem:[%s1451 + $0x30] sm:$0xff]
      %v1459 = vld [vmem:[%s1451 + $0x38] sm:$0xff]
      %v1460 = vld [vmem:[%s1451 + $0x40] sm:$0xff]
      %v1461 = vld [vmem:[%s1451 + $0x48] sm:$0xff]
      %v1462 = vld [vmem:[%s1451 + $0x50] sm:$0xff]
      %v1463 = vld [vmem:[%s1451 + $0x58] sm:$0xff]
      %v1464 = vld [vmem:[%s1451 + $0x60] sm:$0xff]
      %v1465 = vld [vmem:[%s1451 + $0x68] sm:$0xff]
      %v1466 = vld [vmem:[%s1451 + $0x70] sm:$0xff]
      %v1467 = vld [vmem:[%s1451 + $0x78] sm:$0xff]
      %v1468 = vld [vmem:[%s1451 + $0x80] sm:$0xff]
      %v1469 = vld [vmem:[%s1451 + $0x88] sm:$0xff]
      %v1470 = vld [vmem:[%s1451 + $0x90] sm:$0xff]
      %v1471 = vld [vmem:[%s1451 + $0x98] sm:$0xff]
      %v1472 = vld [vmem:[%s1451 + $0xa0] sm:$0xff]
      %v1473 = vld [vmem:[%s1451 + $0xa8] sm:$0xff]
      %v1474 = vld [vmem:[%s1451 + $0xb0] sm:$0xff]
      %v1475 = vld [vmem:[%s1451 + $0xb8] sm:$0xff]
      %v1476 = vld [vmem:[%s1451 + $0xc0] sm:$0xff]
      %v1477 = vld [vmem:[%s1451 + $0xc8] sm:$0xff]
      %v1478 = vld [vmem:[%s1451 + $0xd0] sm:$0xff]
      %v1479 = vld [vmem:[%s1451 + $0xd8] sm:$0xff]
      %v1480 = vld [vmem:[%s1451 + $0xe0] sm:$0xff]
      %v1481 = vld [vmem:[%s1451 + $0xe8] sm:$0xff]
      %v1482 = vld [vmem:[%s1451 + $0xf0] sm:$0xff]
      %v1483 = vld [vmem:[%s1451 + $0xf8] sm:$0xff]
      %v1484 = vld [vmem:[%s1451 + $0x100] sm:$0xff]
      %v1485 = vld [vmem:[%s1451 + $0x108] sm:$0xff]
      %v1486 = vld [vmem:[%s1451 + $0x110] sm:$0xff]
      %v1487 = vld [vmem:[%s1451 + $0x118] sm:$0xff]
      %v1488 = vld [vmem:[%s1451 + $0x120] sm:$0xff]
      %v1489 = vld [vmem:[%s1451 + $0x128] sm:$0xff]
      %v1490 = vld [vmem:[%s1451 + $0x130] sm:$0xff]
      %v1491 = vld [vmem:[%s1451 + $0x138] sm:$0xff]
      %v1492 = vld [vmem:[%s1451 + $0x140] sm:$0xff]
      %v1493 = vld [vmem:[%s1451 + $0x148] sm:$0xff]
      %v1494 = vld [vmem:[%s1451 + $0x150] sm:$0xff]
      %v1495 = vld [vmem:[%s1451 + $0x158] sm:$0xff]
      %v1496 = vld [vmem:[%s1451 + $0x160] sm:$0xff]
      %v1497 = vld [vmem:[%s1451 + $0x168] sm:$0xff]
      %v1498 = vld [vmem:[%s1451 + $0x170] sm:$0xff]
      %v1499 = vld [vmem:[%s1451 + $0x178] sm:$0xff]
      %v1500 = vld [vmem:[%s1451 + $0x180] sm:$0xff]
      %v1501 = vld [vmem:[%s1451 + $0x188] sm:$0xff]
      %v1502 = vld [vmem:[%s1451 + $0x190] sm:$0xff]
      %v1503 = vld [vmem:[%s1451 + $0x198] sm:$0xff]
      %v1504 = vld [vmem:[%s1451 + $0x1a0] sm:$0xff]
      %v1505 = vld [vmem:[%s1451 + $0x1a8] sm:$0xff]
      %v1506 = vld [vmem:[%s1451 + $0x1b0] sm:$0xff]
      %v1507 = vld [vmem:[%s1451 + $0x1b8] sm:$0xff]
      %v1508 = vld [vmem:[%s1451 + $0x1c0] sm:$0xff]
      %v1509 = vld [vmem:[%s1451 + $0x1c8] sm:$0xff]
      %v1510 = vld [vmem:[%s1451 + $0x1d0] sm:$0xff]
      %v1511 = vld [vmem:[%s1451 + $0x1d8] sm:$0xff]
      %v1512 = vld [vmem:[%s1451 + $0x1e0] sm:$0xff]
      %v1513 = vld [vmem:[%s1451 + $0x1e8] sm:$0xff]
      %v1514 = vld [vmem:[%s1451 + $0x1f0] sm:$0xff]
      %v1515 = vld [vmem:[%s1451 + $0x1f8] sm:$0xff]
      %v1516 = vld [vmem:[%s1451 + $0x200] sm:$0xff]
      %v1517 = vld [vmem:[%s1451 + $0x208] sm:$0xff]
      %v1518 = vld [vmem:[%s1451 + $0x210] sm:$0xff]
      %v1519 = vld [vmem:[%s1451 + $0x218] sm:$0xff]
      %v1520 = vld [vmem:[%s1451 + $0x220] sm:$0xff]
      %v1521 = vld [vmem:[%s1451 + $0x228] sm:$0xff]
      %v1522 = vld [vmem:[%s1451 + $0x230] sm:$0xff]
      %v1523 = vld [vmem:[%s1451 + $0x238] sm:$0xff]
      %v1524 = vld [vmem:[%s1451 + $0x240] sm:$0x7]
      %v1525 = vld [vmem:[%s1451 + $0x248] sm:$0x7]
      %v1526 = vld [vmem:[%s1451 + $0x250] sm:$0x7]
      %v1527 = vld [vmem:[%s1451 + $0x258] sm:$0x7]
      %v1528 = vld [vmem:[%s1451 + $0x260] sm:$0x7]
      %v1529 = vld [vmem:[%s1451 + $0x268] sm:$0x7]
      %v1530 = vld [vmem:[%s1451 + $0x270] sm:$0x7]
      %v1531 = vld [vmem:[%s1451 + $0x278] sm:$0x7]
      %v1533 = vsel %vm260, %v1524, 0
      %v1536 = vsel %vm260, %v1525, 0
      %v1539 = vsel %vm260, %v1526, 0
      %v1542 = vsel %vm260, %v1527, 0
      %v1545 = vsel %vm260, %v1528, 0
      %v1548 = vsel %vm260, %v1529, 0
      %v1551 = vsel %vm260, %v1530, 0
      %v1554 = vsel %vm260, %v1531, 0
      %1556 = vmatprep.subr.mxu0 %v1453
      %1557 = vmatpush1.msra.mxu0 %v1452
      %1558 = vmatprep.subr.mxu0 %v1461
      %1559 = vmatpush1.msra.mxu0 %v1460
      %1560 = vmatprep.subr.mxu0 %v1469
      %1561 = vmatpush1.msra.mxu0 %v1468
      %1562 = vmatprep.subr.mxu0 %v1477
      %1563 = vmatpush1.msra.mxu0 %v1476
      %1564 = vmatprep.subr.mxu0 %v1485
      %1565 = vmatpush1.msra.mxu0 %v1484
      %1566 = vmatprep.subr.mxu0 %v1493
      %1567 = vmatpush1.msra.mxu0 %v1492
      %1568 = vmatprep.subr.mxu0 %v1501
      %1569 = vmatpush1.msra.mxu0 %v1500
      %1570 = vmatprep.subr.mxu0 %v1509
      %1571 = vmatpush1.msra.mxu0 %v1508
      %1572 = vmatprep.subr.mxu0 %v1517
      %1573 = vmatpush1.msra.mxu0 %v1516
      %1574 = vmatprep.subr.mxu0 %v1536
      %1575 = vmatpush1.msra.mxu0 %v1533
      %1576 = vmatprep.subr.mxu0 0.0
      %1577 = vmatpush1.msra.mxu0 0.0
      %1578 = vmatprep.subr.mxu0 0.0
      %1579 = vmatpush1.msra.mxu0 0.0
      %1580 = vmatprep.subr.mxu0 0.0
      %1581 = vmatpush1.msra.mxu0 0.0
      %1582 = vmatprep.subr.mxu0 0.0
      %1583 = vmatpush1.msra.mxu0 0.0
      %1584 = vmatprep.subr.mxu0 0.0
      %1585 = vmatpush1.msra.mxu0 0.0
      %1586 = vmatprep.subr.mxu0 0.0
      %1587 = vmatpush1.msra.mxu0 0.0
      %1588 = vmatprep.subr.mxu0 0.0
      %1589 = vmatpush1.msra.mxu0 0.0
      %1590 = vmatprep.subr.mxu0 0.0
      %1591 = vmatpush1.msra.mxu0 0.0
      %1592 = vmatprep.subr.mxu0 0.0
      %1593 = vmatpush1.msra.mxu0 0.0
      %1594 = vmatprep.subr.mxu0 0.0
      %1595 = vmatpush1.msra.mxu0 0.0
      %1596 = vmatprep.subr.mxu0 0.0
      %1597 = vmatpush1.msra.mxu0 0.0
      %1598 = vmatprep.subr.mxu0 0.0
      %1599 = vmatpush1.msra.mxu0 0.0
      %1600 = vmatprep.subr.mxu0 0.0
      %1601 = vmatpush1.msra.mxu0 0.0
      %1602 = vmatprep.subr.mxu0 0.0
      %1603 = vmatpush1.msra.mxu0 0.0
      %1604 = vmatprep.subr.mxu0 0.0
      %1605 = vmatpush1.msra.mxu0 0.0
      %1606 = vmatprep.subr.mxu0 0.0
      %1607 = vmatpush1.msra.mxu0 0.0
      %1608 = vmatprep.subr.mxu0 0.0
      %1609 = vmatpush1.msra.mxu0 0.0
      %1610 = vmatprep.subr.mxu0 0.0
      %1611 = vmatpush1.msra.mxu0 0.0
      %1612 = vmatprep.subr.mxu0 0.0
      %1613 = vmatpush1.msra.mxu0 0.0
      %1614 = vmatprep.subr.mxu0 0.0
      %1615 = vmatpush1.msra.mxu0 0.0
      %1616 = vmatprep.subr.mxu0 0.0
      %1617 = vmatpush1.msra.mxu0 0.0
      %1618 = vmatprep.subr.mxu0 0.0
      %1619 = vmatpush1.msra.mxu0 0.0
      %1620 = vmatprep.mubr.f32.mxu0 0.0
      %1621 = vmatmul.mubr.f32.gmra.mrb[0].mxu0 %v255
      %v1622 = vpop.f32.mrb[0].mxu0
      %v1623 = vadd.f32 0.0, %v1622
      %v1624 = vpop.f32.mrb[0].mxu0
      %v1625 = vadd.f32 0.0, %v1624
      %1626 = vmatprep.mubr.f32.mxu0 0.0
      %1627 = vmatmul.mubr.f32.gmra.mrb[0].mxu0 %v258
      %v1628 = vpop.f32.mrb[0].mxu0
      %v1629 = vadd.f32 0.0, %v1628
      %v1630 = vpop.f32.mrb[0].mxu0
      %v1631 = vadd.f32 0.0, %v1630
      %1632 = vdwg.mxu0
      %1633 = vmatprep.subr.mxu0 %v1455
      %1634 = vmatpush1.msra.mxu0 %v1454
      %1635 = vmatprep.subr.mxu0 %v1463
      %1636 = vmatpush1.msra.mxu0 %v1462
      %1637 = vmatprep.subr.mxu0 %v1471
      %1638 = vmatpush1.msra.mxu0 %v1470
      %1639 = vmatprep.subr.mxu0 %v1479
      %1640 = vmatpush1.msra.mxu0 %v1478
      %1641 = vmatprep.subr.mxu0 %v1487
      %1642 = vmatpush1.msra.mxu0 %v1486
      %1643 = vmatprep.subr.mxu0 %v1495
      %1644 = vmatpush1.msra.mxu0 %v1494
      %1645 = vmatprep.subr.mxu0 %v1503
      %1646 = vmatpush1.msra.mxu0 %v1502
      %1647 = vmatprep.subr.mxu0 %v1511
      %1648 = vmatpush1.msra.mxu0 %v1510
      %1649 = vmatprep.subr.mxu0 %v1519
      %1650 = vmatpush1.msra.mxu0 %v1518
      %1651 = vmatprep.subr.mxu0 %v1542
      %1652 = vmatpush1.msra.mxu0 %v1539
      %1653 = vmatprep.subr.mxu0 0.0
      %1654 = vmatpush1.msra.mxu0 0.0
      %1655 = vmatprep.subr.mxu0 0.0
      %1656 = vmatpush1.msra.mxu0 0.0
      %1657 = vmatprep.subr.mxu0 0.0
      %1658 = vmatpush1.msra.mxu0 0.0
      %1659 = vmatprep.subr.mxu0 0.0
      %1660 = vmatpush1.msra.mxu0 0.0
      %1661 = vmatprep.subr.mxu0 0.0
      %1662 = vmatpush1.msra.mxu0 0.0
      %1663 = vmatprep.subr.mxu0 0.0
      %1664 = vmatpush1.msra.mxu0 0.0
      %1665 = vmatprep.subr.mxu0 0.0
      %1666 = vmatpush1.msra.mxu0 0.0
      %1667 = vmatprep.subr.mxu0 0.0
      %1668 = vmatpush1.msra.mxu0 0.0
      %1669 = vmatprep.subr.mxu0 0.0
      %1670 = vmatpush1.msra.mxu0 0.0
      %1671 = vmatprep.subr.mxu0 0.0
      %1672 = vmatpush1.msra.mxu0 0.0
      %1673 = vmatprep.subr.mxu0 0.0
      %1674 = vmatpush1.msra.mxu0 0.0
      %1675 = vmatprep.subr.mxu0 0.0
      %1676 = vmatpush1.msra.mxu0 0.0
      %1677 = vmatprep.subr.mxu0 0.0
      %1678 = vmatpush1.msra.mxu0 0.0
      %1679 = vmatprep.subr.mxu0 0.0
      %1680 = vmatpush1.msra.mxu0 0.0
      %1681 = vmatprep.subr.mxu0 0.0
      %1682 = vmatpush1.msra.mxu0 0.0
      %1683 = vmatprep.subr.mxu0 0.0
      %1684 = vmatpush1.msra.mxu0 0.0
      %1685 = vmatprep.subr.mxu0 0.0
      %1686 = vmatpush1.msra.mxu0 0.0
      %1687 = vmatprep.subr.mxu0 0.0
      %1688 = vmatpush1.msra.mxu0 0.0
      %1689 = vmatprep.subr.mxu0 0.0
      %1690 = vmatpush1.msra.mxu0 0.0
      %1691 = vmatprep.subr.mxu0 0.0
      %1692 = vmatpush1.msra.mxu0 0.0
      %1693 = vmatprep.subr.mxu0 0.0
      %1694 = vmatpush1.msra.mxu0 0.0
      %1695 = vmatprep.subr.mxu0 0.0
      %1696 = vmatpush1.msra.mxu0 0.0
      %1697 = vmatprep.mubr.f32.mxu0 0.0
      %1698 = vmatmul.mubr.f32.gmra.mrb[0].mxu0 %v255
      %v1699 = vpop.f32.mrb[0].mxu0
      %v1700 = vadd.f32 0.0, %v1699
      %v1701 = vpop.f32.mrb[0].mxu0
      %v1702 = vadd.f32 0.0, %v1701
      %1703 = vmatprep.mubr.f32.mxu0 0.0
      %1704 = vmatmul.mubr.f32.gmra.mrb[0].mxu0 %v258
      %v1705 = vpop.f32.mrb[0].mxu0
      %v1706 = vadd.f32 0.0, %v1705
      %v1707 = vpop.f32.mrb[0].mxu0
      %v1708 = vadd.f32 0.0, %v1707
      %1709 = vdwg.mxu0
      %1710 = vmatprep.subr.mxu0 %v1457
      %1711 = vmatpush1.msra.mxu0 %v1456
      %1712 = vmatprep.subr.mxu0 %v1465
      %1713 = vmatpush1.msra.mxu0 %v1464
      %1714 = vmatprep.subr.mxu0 %v1473
      %1715 = vmatpush1.msra.mxu0 %v1472
      %1716 = vmatprep.subr.mxu0 %v1481
      %1717 = vmatpush1.msra.mxu0 %v1480
      %1718 = vmatprep.subr.mxu0 %v1489
      %1719 = vmatpush1.msra.mxu0 %v1488
      %1720 = vmatprep.subr.mxu0 %v1497
      %1721 = vmatpush1.msra.mxu0 %v1496
      %1722 = vmatprep.subr.mxu0 %v1505
      %1723 = vmatpush1.msra.mxu0 %v1504
      %1724 = vmatprep.subr.mxu0 %v1513
      %1725 = vmatpush1.msra.mxu0 %v1512
      %1726 = vmatprep.subr.mxu0 %v1521
      %1727 = vmatpush1.msra.mxu0 %v1520
      %1728 = vmatprep.subr.mxu0 %v1548
      %1729 = vmatpush1.msra.mxu0 %v1545
      %1730 = vmatprep.subr.mxu0 0.0
      %1731 = vmatpush1.msra.mxu0 0.0
      %1732 = vmatprep.subr.mxu0 0.0
      %1733 = vmatpush1.msra.mxu0 0.0
      %1734 = vmatprep.subr.mxu0 0.0
      %1735 = vmatpush1.msra.mxu0 0.0
      %1736 = vmatprep.subr.mxu0 0.0
      %1737 = vmatpush1.msra.mxu0 0.0
      %1738 = vmatprep.subr.mxu0 0.0
      %1739 = vmatpush1.msra.mxu0 0.0
      %1740 = vmatprep.subr.mxu0 0.0
      %1741 = vmatpush1.msra.mxu0 0.0
      %1742 = vmatprep.subr.mxu0 0.0
      %1743 = vmatpush1.msra.mxu0 0.0
      %1744 = vmatprep.subr.mxu0 0.0
      %1745 = vmatpush1.msra.mxu0 0.0
      %1746 = vmatprep.subr.mxu0 0.0
      %1747 = vmatpush1.msra.mxu0 0.0
      %1748 = vmatprep.subr.mxu0 0.0
      %1749 = vmatpush1.msra.mxu0 0.0
      %1750 = vmatprep.subr.mxu0 0.0
      %1751 = vmatpush1.msra.mxu0 0.0
      %1752 = vmatprep.subr.mxu0 0.0
      %1753 = vmatpush1.msra.mxu0 0.0
      %1754 = vmatprep.subr.mxu0 0.0
      %1755 = vmatpush1.msra.mxu0 0.0
      %1756 = vmatprep.subr.mxu0 0.0
      %1757 = vmatpush1.msra.mxu0 0.0
      %1758 = vmatprep.subr.mxu0 0.0
      %1759 = vmatpush1.msra.mxu0 0.0
      %1760 = vmatprep.subr.mxu0 0.0
      %1761 = vmatpush1.msra.mxu0 0.0
      %1762 = vmatprep.subr.mxu0 0.0
      %1763 = vmatpush1.msra.mxu0 0.0
      %1764 = vmatprep.subr.mxu0 0.0
      %1765 = vmatpush1.msra.mxu0 0.0
      %1766 = vmatprep.subr.mxu0 0.0
      %1767 = vmatpush1.msra.mxu0 0.0
      %1768 = vmatprep.subr.mxu0 0.0
      %1769 = vmatpush1.msra.mxu0 0.0
      %1770 = vmatprep.subr.mxu0 0.0
      %1771 = vmatpush1.msra.mxu0 0.0
      %1772 = vmatprep.subr.mxu0 0.0
      %1773 = vmatpush1.msra.mxu0 0.0
      %1774 = vmatprep.mubr.f32.mxu0 0.0
      %1775 = vmatmul.mubr.f32.gmra.mrb[0].mxu0 %v255
      %v1776 = vpop.f32.mrb[0].mxu0
      %v1777 = vadd.f32 0.0, %v1776
      %v1778 = vpop.f32.mrb[0].mxu0
      %v1779 = vadd.f32 0.0, %v1778
      %1780 = vmatprep.mubr.f32.mxu0 0.0
      %1781 = vmatmul.mubr.f32.gmra.mrb[0].mxu0 %v258
      %v1782 = vpop.f32.mrb[0].mxu0
      %v1783 = vadd.f32 0.0, %v1782
      %v1784 = vpop.f32.mrb[0].mxu0
      %v1785 = vadd.f32 0.0, %v1784
      %1786 = vdwg.mxu0
      %1787 = vmatprep.subr.mxu0 %v1459
      %1788 = vmatpush1.msra.mxu0 %v1458
      %1789 = vmatprep.subr.mxu0 %v1467
      %1790 = vmatpush1.msra.mxu0 %v1466
      %1791 = vmatprep.subr.mxu0 %v1475
      %1792 = vmatpush1.msra.mxu0 %v1474
      %1793 = vmatprep.subr.mxu0 %v1483
      %1794 = vmatpush1.msra.mxu0 %v1482
      %1795 = vmatprep.subr.mxu0 %v1491
      %1796 = vmatpush1.msra.mxu0 %v1490
      %1797 = vmatprep.subr.mxu0 %v1499
      %1798 = vmatpush1.msra.mxu0 %v1498
      %1799 = vmatprep.subr.mxu0 %v1507
      %1800 = vmatpush1.msra.mxu0 %v1506
      %1801 = vmatprep.subr.mxu0 %v1515
      %1802 = vmatpush1.msra.mxu0 %v1514
      %1803 = vmatprep.subr.mxu0 %v1523
      %1804 = vmatpush1.msra.mxu0 %v1522
      %1805 = vmatprep.subr.mxu0 %v1554
      %1806 = vmatpush1.msra.mxu0 %v1551
      %1807 = vmatprep.subr.mxu0 0.0
      %1808 = vmatpush1.msra.mxu0 0.0
      %1809 = vmatprep.subr.mxu0 0.0
      %1810 = vmatpush1.msra.mxu0 0.0
      %1811 = vmatprep.subr.mxu0 0.0
      %1812 = vmatpush1.msra.mxu0 0.0
      %1813 = vmatprep.subr.mxu0 0.0
      %1814 = vmatpush1.msra.mxu0 0.0
      %1815 = vmatprep.subr.mxu0 0.0
      %1816 = vmatpush1.msra.mxu0 0.0
      %1817 = vmatprep.subr.mxu0 0.0
      %1818 = vmatpush1.msra.mxu0 0.0
      %1819 = vmatprep.subr.mxu0 0.0
      %1820 = vmatpush1.msra.mxu0 0.0
      %1821 = vmatprep.subr.mxu0 0.0
      %1822 = vmatpush1.msra.mxu0 0.0
      %1823 = vmatprep.subr.mxu0 0.0
      %1824 = vmatpush1.msra.mxu0 0.0
      %1825 = vmatprep.subr.mxu0 0.0
      %1826 = vmatpush1.msra.mxu0 0.0
      %1827 = vmatprep.subr.mxu0 0.0
      %1828 = vmatpush1.msra.mxu0 0.0
      %1829 = vmatprep.subr.mxu0 0.0
      %1830 = vmatpush1.msra.mxu0 0.0
      %1831 = vmatprep.subr.mxu0 0.0
      %1832 = vmatpush1.msra.mxu0 0.0
      %1833 = vmatprep.subr.mxu0 0.0
      %1834 = vmatpush1.msra.mxu0 0.0
      %1835 = vmatprep.subr.mxu0 0.0
      %1836 = vmatpush1.msra.mxu0 0.0
      %1837 = vmatprep.subr.mxu0 0.0
      %1838 = vmatpush1.msra.mxu0 0.0
      %1839 = vmatprep.subr.mxu0 0.0
      %1840 = vmatpush1.msra.mxu0 0.0
      %1841 = vmatprep.subr.mxu0 0.0
      %1842 = vmatpush1.msra.mxu0 0.0
      %1843 = vmatprep.subr.mxu0 0.0
      %1844 = vmatpush1.msra.mxu0 0.0
      %1845 = vmatprep.subr.mxu0 0.0
      %1846 = vmatpush1.msra.mxu0 0.0
      %1847 = vmatprep.subr.mxu0 0.0
      %1848 = vmatpush1.msra.mxu0 0.0
      %1849 = vmatprep.subr.mxu0 0.0
      %1850 = vmatpush1.msra.mxu0 0.0
      %1851 = vmatprep.mubr.f32.mxu0 0.0
      %1852 = vmatmul.mubr.f32.gmra.mrb[0].mxu0 %v255
      %v1853 = vpop.f32.mrb[0].mxu0
      %v1854 = vadd.f32 0.0, %v1853
      %v1855 = vpop.f32.mrb[0].mxu0
      %v1856 = vadd.f32 0.0, %v1855
      %1857 = vmatprep.mubr.f32.mxu0 0.0
      %1858 = vmatmul.mubr.f32.gmra.mrb[0].mxu0 %v258
      %v1859 = vpop.f32.mrb[0].mxu0
      %v1860 = vadd.f32 0.0, %v1859
      %v1861 = vpop.f32.mrb[0].mxu0
      %v1862 = vadd.f32 0.0, %v1861
      %1863 = vdwg.mxu0
      %v1864 = vmax.f32 %v1435, %v1623
      %v1865 = vmax.f32 %v1436, %v1625
      %v1866 = vmax.f32 %v1437, %v1700
      %v1867 = vmax.f32 %v1438, %v1702
      %v1868 = vmax.f32 %v1439, %v1777
      %v1869 = vmax.f32 %v1440, %v1779
      %v1870 = vmax.f32 %v1441, %v1854
      %v1871 = vmax.f32 %v1442, %v1856
      %v1872 = vmax.f32 %v1443, %v1629
      %v1873 = vmax.f32 %v1444, %v1631
      %v1874 = vmax.f32 %v1445, %v1706
      %v1875 = vmax.f32 %v1446, %v1708
      %v1876 = vmax.f32 %v1447, %v1783
      %v1877 = vmax.f32 %v1448, %v1785
      %v1878 = vmax.f32 %v1449, %v1860
      %v1879 = vmax.f32 %v1450, %v1862
      %v1880 = vld [vmem:[%s1] sm:$0xff]
      %v1881 = vld [vmem:[%s1 + $0x8] sm:$0x3]
      %1883 = vset.pattern.permute.xlu0 0
      %1884 = vperm.xlu0 %1883, %v1880
      %v1885 = vpop.permute.xlu0 %1884
      %1888 = vset.pattern.permute.xlu0 0
      %1889 = vperm.xlu0 %1888, %v1881
      %v1890 = vpop.permute.xlu0 %1889
      %v1892 = vadd.f32 %v1864, %v1885
      %v1893 = vadd.f32 %v1865, %v1885
      %v1894 = vadd.f32 %v1866, %v1885
      %v1895 = vadd.f32 %v1867, %v1885
      %v1896 = vadd.f32 %v1868, %v1885
      %v1897 = vadd.f32 %v1869, %v1885
      %v1898 = vadd.f32 %v1870, %v1885
      %v1899 = vadd.f32 %v1871, %v1885
      %v1900 = vadd.f32 %v1872, %v1890
      %v1901 = vadd.f32 %v1873, %v1890
      %v1902 = vadd.f32 %v1874, %v1890
      %v1903 = vadd.f32 %v1875, %v1890
      %v1904 = vadd.f32 %v1876, %v1890
      %v1905 = vadd.f32 %v1877, %v1890
      %v1906 = vadd.f32 %v1878, %v1890
      %v1907 = vadd.f32 %v1879, %v1890
      %v1908 = vmax.f32 %v1892, 0.0
      %v1909 = vmax.f32 %v1893, 0.0
      %v1910 = vmax.f32 %v1894, 0.0
      %v1911 = vmax.f32 %v1895, 0.0
      %v1912 = vmax.f32 %v1896, 0.0
      %v1913 = vmax.f32 %v1897, 0.0
      %v1914 = vmax.f32 %v1898, 0.0
      %v1915 = vmax.f32 %v1899, 0.0
      %v1916 = vmax.f32 %v1900, 0.0
      %v1917 = vmax.f32 %v1901, 0.0
      %v1918 = vmax.f32 %v1902, 0.0
      %v1919 = vmax.f32 %v1903, 0.0
      %v1920 = vmax.f32 %v1904, 0.0
      %v1921 = vmax.f32 %v1905, 0.0
      %v1922 = vmax.f32 %v1906, 0.0
      %v1923 = vmax.f32 %v1907, 0.0
      %1924 = vst [vmem:[%s170] sm:$0xff] %v1908
      %1925 = vst [vmem:[%s170 + $0x8] sm:$0xff] %v1909
      %1926 = vst [vmem:[%s170 + $0x10] sm:$0xff] %v1910
      %1927 = vst [vmem:[%s170 + $0x18] sm:$0xff] %v1911
      %1928 = vst [vmem:[%s170 + $0x20] sm:$0xff] %v1912
      %1929 = vst [vmem:[%s170 + $0x28] sm:$0xff] %v1913
      %1930 = vst [vmem:[%s170 + $0x30] sm:$0xff] %v1914
      %vm1931 = vcmask 31744
      %1932 = vst.msk [vmem:[%s170 + $0x38] sm:$0xff] %vm1931, %v1915
      %1933 = vst [vmem:[%s170 + $0x40] sm:$0x3] %v1916
      %1934 = vst [vmem:[%s170 + $0x48] sm:$0x3] %v1917
      %1935 = vst [vmem:[%s170 + $0x50] sm:$0x3] %v1918
      %1936 = vst [vmem:[%s170 + $0x58] sm:$0x3] %v1919
      %1937 = vst [vmem:[%s170 + $0x60] sm:$0x3] %v1920
      %1938 = vst [vmem:[%s170 + $0x68] sm:$0x3] %v1921
      %1939 = vst [vmem:[%s170 + $0x70] sm:$0x3] %v1922
      %vm1940 = vcmask 25600
      %1941 = vst.msk [vmem:[%s170 + $0x78] sm:$0x3] %vm1940, %v1923
      %p1942 = scmp.lt.s32.totalorder %s14, 1
      %s1943 = scalar_select %p1942, %s14, 1
      %s1944 = smul.addr %s1943, 16
      %s1945 = smul.addr %s1944, 8
      %s1946 = scalar_lea.vmem %s3, %s1945
      // Predicated region
      $region33: #{tpu_custom_call.1} parent=31 // pred_check
        %p1947 = pneg %p100
      $region34: #{tpu_custom_call.1} parent=31 // pred_check_branch
        %1949 = sbr.rel (%p1947) target = $region36
      $region35: #{tpu_custom_call.1} parent=31 // pred_region
        _
      $region36: #{tpu_custom_call.1} parent=31 // pred_fallthru
        _
    $region32: #{tpu_custom_call.1} parent=5 // pred_fallthru
      _
    %p1950 = scmp.le.s32.totalorder 2, %s9
    // Predicated region
    $region37: #{tpu_custom_call.1} parent=5 // pred_check
      %p1951 = pneg %p1950
    $region38: #{tpu_custom_call.1} parent=5 // pred_check_branch
      %1953 = sbr.rel (%p1951) target = $region40
    $region39: #{tpu_custom_call.1} parent=5 // pred_region
      %s1954 = ssub.s32 %s9, 2
      // Predicated region
      $region41: #{tpu_custom_call.1} parent=39 // pred_check
        %p1955 = pneg %p106
      $region42: #{tpu_custom_call.1} parent=39 // pred_check_branch
        %1957 = sbr.rel (%p1955) target = $region44
      $region43: #{tpu_custom_call.1} parent=39 // pred_region
        %p1958 = scmp.lt.s32.totalorder %s15, 1
        %s1959 = scalar_select %p1958, %s15, 1
        %s1960 = smul.addr %s1959, 16
        %s1961 = smul.addr %s1960, 8
        %s1962 = scalar_lea.vmem %s3, %s1961
      $region44: #{tpu_custom_call.1} parent=39 // pred_fallthru
        _
    $region40: #{tpu_custom_call.1} parent=5 // pred_fallthru
      _
  $region6: #{tpu_custom_call.1} parent=0 // loop_footer
    %s13 = sadd.s32 1, %s9
  $region7: #{tpu_custom_call.1} parent=0 // loop_footer_branch
    %8 = sbr.rel target = $region3
  $region8: #{tpu_custom_call.1} parent=0 // loop_exit
    _

</llo_original>
